<compile_context>
chip_gen: v6e
topology: v6e:2x2x1
jax: 0.10.0
libtpu: 0.0.40
codegen_flags: <defaults>
</compile_context>

<pallas_src>
import functools

import jax
import jax.numpy as jnp
import numpy as np
from jax.experimental import pallas as pl
from jax.experimental.pallas import tpu as pltpu


def _round_up(x, m):
    return ((x + m - 1) // m) * m


# ----------------------------------------------------------------------------
# VMEM budget estimates (double-buffered BlockSpec windows + scratch)
# ----------------------------------------------------------------------------
def _recurrence_vmem_bytes(TC, Bp, I, Hp, cdtype):
    cs = jnp.dtype(cdtype).itemsize
    f4 = 4
    windows = 2 * (2 * TC * Bp * I * cs        # x chunk (fwd view + bwd view)
                   + 2 * I * 4 * Hp * cs       # W_x fwd/bwd
                   + 2 * 4 * Hp * f4           # biases fwd/bwd
                   + 2 * Hp * 4 * Hp * cs      # W_h fwd/bwd
                   + 2 * TC * Bp * Hp * cs)    # hidden-state output chunks fwd/bwd
    scratch = 2 * TC * Bp * 4 * Hp * f4 + 4 * Bp * Hp * f4
    return windows + scratch


def _linear_vmem_bytes(TC, Bp, Hp, Op, cdtype):
    cs = jnp.dtype(cdtype).itemsize
    f4 = 4
    windows = 2 * (2 * TC * Bp * Hp * cs + 2 * Hp * Op * cs + Op * f4 + TC * Bp * Op * f4)
    temps = TC * Bp * 2 * Hp * cs + TC * Bp * Op * f4
    return windows + temps


# ----------------------------------------------------------------------------
# Kernel 1: fused bidirectional recurrence, chunked over time.
#   Grid step c: forward direction consumes time-chunk c, backward direction consumes
#   time-chunk NC-1-c (processed in reverse local order).  (h, c) carries persist in
#   VMEM scratch across grid steps.
# ----------------------------------------------------------------------------
def _bilstm_recurrence_kernel(xf_ref, xb_ref, wxf_ref, wxb_ref, bf_ref, bb_ref,
                              whf_ref, whb_ref,
                              hf_out_ref, hb_out_ref,
                              gxf_ref, gxb_ref, hfc_ref, cfc_ref, hbc_ref, cbc_ref,
                              *, n_pad, unroll):
    TC, Bp, I = xf_ref.shape
    Hp = hfc_ref.shape[-1]
    c = pl.program_id(0)

    @pl.when(c == 0)
    def _init():
        hfc_ref[...] = jnp.zeros_like(hfc_ref)
        cfc_ref[...] = jnp.zeros_like(cfc_ref)
        hbc_ref[...] = jnp.zeros_like(hbc_ref)
        cbc_ref[...] = jnp.zeros_like(cbc_ref)

    # Hoisted per-chunk input projection: one chunk-sized MXU matmul per direction (bf16 in,
    # f32 accumulate), gate pre-activations parked in per-chunk VMEM scratch.
    xf = xf_ref[...].reshape(TC * Bp, I)
    xb = xb_ref[...].reshape(TC * Bp, I)
    gxf_ref[...] = (jnp.dot(xf, wxf_ref[...], preferred_element_type=jnp.float32)
                    + bf_ref[...]).reshape(TC, Bp, 4 * Hp)
    gxb_ref[...] = (jnp.dot(xb, wxb_ref[...], preferred_element_type=jnp.float32)
                    + bb_ref[...]).reshape(TC, Bp, 4 * Hp)

    whf = whf_ref[...]
    whb = whb_ref[...]

    def lstm_step(gx, h, c_state, wh):
        gates = gx + jnp.dot(h.astype(wh.dtype), wh, preferred_element_type=jnp.float32)
        i = jax.nn.sigmoid(gates[:, 0 * Hp:1 * Hp])
        f = jax.nn.sigmoid(gates[:, 1 * Hp:2 * Hp])
        g = jnp.tanh(gates[:, 2 * Hp:3 * Hp])
        o = jax.nn.sigmoid(gates[:, 3 * Hp:4 * Hp])
        c_new = f * c_state + i * g
        h_new = o * jnp.tanh(c_new)
        return h_new, c_new

    def body(s, carry):
        h_f, c_f, h_b, c_b = carry
        # forward: local time s; backward: local time TC-1-s of the mirrored chunk
        hf_new, cf_new = lstm_step(gxf_ref[s], h_f, c_f, whf)
        hb_new, cb_new = lstm_step(gxb_ref[TC - 1 - s], h_b, c_b, whb)
        if n_pad > 0:
            # Time was padded to a multiple of the chunk: the padded timesteps sit at the end
            # of the sequence, which the *backward* pass visits first (grid step 0, s < n_pad).
            # Pass the backward carry through unchanged on those steps.
            is_pad = jnp.logical_and(c == 0, s < n_pad)
            hb_new = jnp.where(is_pad, h_b, hb_new)
            cb_new = jnp.where(is_pad, c_b, cb_new)
        hf_out_ref[s] = hf_new.astype(hf_out_ref.dtype)
        hb_out_ref[TC - 1 - s] = hb_new.astype(hb_out_ref.dtype)
        return hf_new, cf_new, hb_new, cb_new

    carry0 = (hfc_ref[...], cfc_ref[...], hbc_ref[...], cbc_ref[...])
    h_f, c_f, h_b, c_b = jax.lax.fori_loop(0, TC, body, carry0, unroll=unroll)
    hfc_ref[...] = h_f
    cfc_ref[...] = c_f
    hbc_ref[...] = h_b
    cbc_ref[...] = c_b


# ----------------------------------------------------------------------------
# Kernel 2: final Linear, pipelined over time-chunks ("parallel" grid axis).
# Single 2H-deep contraction to fill the 256-deep MXU on v6e/v7x; lane-dense store.
# ----------------------------------------------------------------------------
def _linear_kernel(hf_ref, hb_ref, w_ref, b_ref, out_ref):
    TC, Bp, Hp = hf_ref.shape
    Op = out_ref.shape[-1]
    h = jnp.concatenate([hf_ref[...], hb_ref[...]], axis=-1).reshape(TC * Bp, 2 * Hp)
    out = jnp.dot(h, w_ref[...], preferred_element_type=jnp.float32) + b_ref[...]
    out_ref[...] = out.reshape(TC, Bp, Op).astype(out_ref.dtype)


# ----------------------------------------------------------------------------
# Wrapper: PyTorch-compatible parameter shapes, batch-first input/output.
# ----------------------------------------------------------------------------
def bidirectional_lstm(x, params, *, time_chunk=64, compute_dtype=jnp.bfloat16):
    """x: (B, T, input_size) float32 -> (B, T, output_size) float32."""
    B, T, I = x.shape
    H = params['whh_f'].shape[1]          # weight_hh: (4H, H)
    O = params['wlin'].shape[0]           # linear weight: (O, 2H)

    Bp = _round_up(B, 8)                  # sublane alignment
    Hp = _round_up(H, 128)                # lane alignment (zero-padded hidden units stay 0)
    Op = _round_up(O, 128)                # lane-dense output store; un-padded below
    cd = compute_dtype
    f32 = jnp.float32

    # Pick a time-chunk that keeps the recurrence call inside a v7x-safe VMEM budget.
    TC = max(1, min(time_chunk, T))
    while _recurrence_vmem_bytes(TC, Bp, I, Hp, cd) > (40 << 20) and TC > 8:
        TC = (TC + 1) // 2
    NC = (T + TC - 1) // TC
    T_pad = NC * TC
    n_pad = T_pad - T

    # ---- inputs: time-major, padded to (T_pad, Bp, I) ----
    x_tbi = jnp.transpose(x, (1, 0, 2)).astype(cd)
    x_tbi = jnp.pad(x_tbi, ((0, T_pad - T), (0, Bp - B), (0, 0)))

    # ---- per-direction LSTM weights, PyTorch gate order (i, f, g, o), each gate padded to Hp ----
    def prep_dir(sfx):
        wih = params['wih_' + sfx].astype(f32)                         # (4H, I)
        whh = params['whh_' + sfx].astype(f32)                         # (4H, H)
        bias = (params['bih_' + sfx] + params['bhh_' + sfx]).astype(f32)
        wx_blk, wh_blk, b_blk = [], [], []
        for k in range(4):
            wx_blk.append(jnp.pad(wih[k * H:(k + 1) * H, :].T, ((0, 0), (0, Hp - H))))
            wh_blk.append(jnp.pad(whh[k * H:(k + 1) * H, :].T, ((0, Hp - H), (0, Hp - H))))
            b_blk.append(jnp.pad(bias[k * H:(k + 1) * H], (0, Hp - H)))
        Wx = jnp.concatenate(wx_blk, axis=1).astype(cd)                # (I, 4Hp)
        Wh = jnp.concatenate(wh_blk, axis=1).astype(cd)                # (Hp, 4Hp)
        bc = jnp.concatenate(b_blk).reshape(1, 4 * Hp)                 # (1, 4Hp) f32
        return Wx, Wh, bc

    Wx_f, Wh_f, bias_f = prep_dir('f')
    Wx_b, Wh_b, bias_b = prep_dir('b')

    # ---- final Linear: combined (2Hp, Op) weight for one 2H-deep contraction ----
    wlin = params['wlin'].astype(f32)                                  # (O, 2H)
    wl_f = jnp.pad(wlin[:, :H].T, ((0, Hp - H), (0, Op - O)))
    wl_b = jnp.pad(wlin[:, H:].T, ((0, Hp - H), (0, Op - O)))
    W_lin = jnp.concatenate([wl_f, wl_b], axis=0).astype(cd)           # (2Hp, Op)
    b_lin = jnp.pad(params['blin'].astype(f32), (0, Op - O)).reshape(1, Op)

    # ===================== call 1: chunked bidirectional recurrence =====================
    rec_est = _recurrence_vmem_bytes(TC, Bp, I, Hp, cd)
    rec_limit = int(min(max(rec_est * 3 // 2 + (2 << 20), 16 << 20), 56 << 20))

    rec_grid = pltpu.PrefetchScalarGridSpec(
        num_scalar_prefetch=0,
        grid=(NC,),
        in_specs=[
            pl.BlockSpec((TC, Bp, I), lambda c: (c, 0, 0)),              # x, forward chunk
            pl.BlockSpec((TC, Bp, I), lambda c: (NC - 1 - c, 0, 0)),     # x, backward chunk
            pl.BlockSpec((I, 4 * Hp), lambda c: (0, 0)),                 # W_x fwd (resident)
            pl.BlockSpec((I, 4 * Hp), lambda c: (0, 0)),                 # W_x bwd
            pl.BlockSpec((1, 4 * Hp), lambda c: (0, 0)),                 # bias fwd
            pl.BlockSpec((1, 4 * Hp), lambda c: (0, 0)),                 # bias bwd
            pl.BlockSpec((Hp, 4 * Hp), lambda c: (0, 0)),                # W_h fwd
            pl.BlockSpec((Hp, 4 * Hp), lambda c: (0, 0)),                # W_h bwd
        ],
        out_specs=[
            pl.BlockSpec((TC, Bp, Hp), lambda c: (c, 0, 0)),             # forward hidden states
            pl.BlockSpec((TC, Bp, Hp), lambda c: (NC - 1 - c, 0, 0)),    # backward hidden states
        ],
        scratch_shapes=[
            pltpu.VMEM((TC, Bp, 4 * Hp), jnp.float32),   # fwd gate pre-activations (per chunk)
            pltpu.VMEM((TC, Bp, 4 * Hp), jnp.float32),   # bwd gate pre-activations (per chunk)
            pltpu.VMEM((Bp, Hp), jnp.float32),           # h carry, forward
            pltpu.VMEM((Bp, Hp), jnp.float32),           # c carry, forward
            pltpu.VMEM((Bp, Hp), jnp.float32),           # h carry, backward
            pltpu.VMEM((Bp, Hp), jnp.float32),           # c carry, backward
        ],
    )

    hf, hb = pl.pallas_call(
        functools.partial(_bilstm_recurrence_kernel, n_pad=n_pad, unroll=min(4, TC)),
        out_shape=(jax.ShapeDtypeStruct((T_pad, Bp, Hp), cd),
                   jax.ShapeDtypeStruct((T_pad, Bp, Hp), cd)),
        grid_spec=rec_grid,
        compiler_params=pltpu.CompilerParams(
            dimension_semantics=("arbitrary",),          # carried state across chunks
            vmem_limit_bytes=rec_limit),
    )(x_tbi, x_tbi, Wx_f, Wx_b, bias_f, bias_b, Wh_f, Wh_b)

    # ===================== call 2: epilogue Linear, pipelined over chunks =====================
    lin_est = _linear_vmem_bytes(TC, Bp, Hp, Op, cd)
    lin_limit = int(min(max(lin_est * 3 // 2 + (2 << 20), 16 << 20), 56 << 20))

    lin_grid = pltpu.PrefetchScalarGridSpec(
        num_scalar_prefetch=0,
        grid=(NC,),
        in_specs=[
            pl.BlockSpec((TC, Bp, Hp), lambda c: (c, 0, 0)),
            pl.BlockSpec((TC, Bp, Hp), lambda c: (c, 0, 0)),
            pl.BlockSpec((2 * Hp, Op), lambda c: (0, 0)),
            pl.BlockSpec((1, Op), lambda c: (0, 0)),
        ],
        out_specs=pl.BlockSpec((TC, Bp, Op), lambda c: (c, 0, 0)),
    )

    out_tbo = pl.pallas_call(
        _linear_kernel,
        out_shape=jax.ShapeDtypeStruct((T_pad, Bp, Op), jnp.float32),
        grid_spec=lin_grid,
        compiler_params=pltpu.CompilerParams(
            dimension_semantics=("parallel",),
            vmem_limit_bytes=lin_limit),
    )(hf, hb, W_lin, b_lin)

    return jnp.transpose(out_tbo[:T, :B, :O], (1, 0, 2))                # (B, T, O)


# ----------------------------------------------------------------------------
# Pure-JAX reference (mirrors torch.nn.LSTM(bidirectional) + nn.Linear), f32.
# ----------------------------------------------------------------------------
def _lstm_dir_ref(x, wih, whh, bih, bhh, reverse):
    B, T, I = x.shape
    H = whh.shape[1]

    def step(carry, xt):
        h, c = carry
        gates = xt @ wih.T + bih + h @ whh.T + bhh
        i, f, g, o = jnp.split(gates, 4, axis=-1)
        i = jax.nn.sigmoid(i)
        f = jax.nn.sigmoid(f)
        g = jnp.tanh(g)
        o = jax.nn.sigmoid(o)
        c = f * c + i * g
        h = o * jnp.tanh(c)
        return (h, c), h

    xs = jnp.transpose(x, (1, 0, 2))
    if reverse:
        xs = xs[::-1]
    _, hs = jax.lax.scan(step, (jnp.zeros((B, H)), jnp.zeros((B, H))), xs)
    if reverse:
        hs = hs[::-1]
    return jnp.transpose(hs, (1, 0, 2))


def reference_forward(x, p):
    hf = _lstm_dir_ref(x, p['wih_f'], p['whh_f'], p['bih_f'], p['bhh_f'], False)
    hb = _lstm_dir_ref(x, p['wih_b'], p['whh_b'], p['bih_b'], p['bhh_b'], True)
    rec = jnp.concatenate([hf, hb], axis=-1)
    return rec @ p['wlin'].T + p['blin']


# ----------------------------------------------------------------------------
if __name__ == "__main__":
    B, T = 2, 8
    INPUT_SIZE, HIDDEN_SIZE, OUTPUT_SIZE = 16, 32, 16

    key = jax.random.PRNGKey(0)
    keys = jax.random.split(key, 11)

    def u(k, shape):
        return jax.random.uniform(k, shape, jnp.float32, -0.1, 0.1)

    H = HIDDEN_SIZE
    params = {
        'wih_f': u(keys[0], (4 * H, INPUT_SIZE)),
        'whh_f': u(keys[1], (4 * H, H)),
        'bih_f': u(keys[2], (4 * H,)),
        'bhh_f': u(keys[3], (4 * H,)),
        'wih_b': u(keys[4], (4 * H, INPUT_SIZE)),
        'whh_b': u(keys[5], (4 * H, H)),
        'bih_b': u(keys[6], (4 * H,)),
        'bhh_b': u(keys[7], (4 * H,)),
        'wlin':  u(keys[8], (OUTPUT_SIZE, 2 * H)),
        'blin':  u(keys[9], (OUTPUT_SIZE,)),
    }
    x = jax.random.normal(keys[10], (B, T, INPUT_SIZE), jnp.float32)

    # time_chunk=3 deliberately exercises the chunked path: multiple grid steps with carried
    # h/c state, plus a padded last chunk (T=8 -> T_pad=9) handled by the backward-pass mask.
    out = jax.block_until_ready(bidirectional_lstm(x, params, time_chunk=3))
    ref = jax.block_until_ready(reference_forward(x, params))

    assert out.shape == (B, T, OUTPUT_SIZE), out.shape
    # bf16 MXU path vs f32 reference -> relaxed tolerance (values are O(0.1)).
    np.testing.assert_allclose(np.asarray(out), np.asarray(ref), rtol=2e-2, atol=2e-2)
    print("KERNEL_OK")
</pallas_src>

<mosaic_0001>
module attributes {stable_mosaic.version = 11 : i64} {
  func.func @_bilstm_recurrence_kernel(%arg0: i32, %arg1: memref<3x8x16xbf16, #tpu.memory_space<vmem>>, %arg2: memref<3x8x16xbf16, #tpu.memory_space<vmem>>, %arg3: memref<16x512xbf16, #tpu.memory_space<vmem>>, %arg4: memref<16x512xbf16, #tpu.memory_space<vmem>>, %arg5: memref<1x512xf32, #tpu.memory_space<vmem>>, %arg6: memref<1x512xf32, #tpu.memory_space<vmem>>, %arg7: memref<128x512xbf16, #tpu.memory_space<vmem>>, %arg8: memref<128x512xbf16, #tpu.memory_space<vmem>>, %arg9: memref<3x8x128xbf16, #tpu.memory_space<vmem>>, %arg10: memref<3x8x128xbf16, #tpu.memory_space<vmem>>, %arg11: memref<3x8x512xf32, #tpu.memory_space<vmem>>, %arg12: memref<3x8x512xf32, #tpu.memory_space<vmem>>, %arg13: memref<8x128xf32, #tpu.memory_space<vmem>>, %arg14: memref<8x128xf32, #tpu.memory_space<vmem>>, %arg15: memref<8x128xf32, #tpu.memory_space<vmem>>, %arg16: memref<8x128xf32, #tpu.memory_space<vmem>>) attributes {dimension_semantics = [#tpu.dimension_semantics<arbitrary>], iteration_bounds = array<i64: 3>, scalar_prefetch = 0 : i64, scratch_operands = 6 : i64, tpu.core_type = #tpu.core_type<tc>, window_params = [{transform_indices = @transform_0, window_bounds = array<i64: 3, 8, 16>}, {transform_indices = @transform_1, window_bounds = array<i64: 3, 8, 16>}, {pipeline_mode = #tpu.pipeline_mode<synchronous>, transform_indices = @transform_2, window_bounds = array<i64: 16, 512>}, {pipeline_mode = #tpu.pipeline_mode<synchronous>, transform_indices = @transform_3, window_bounds = array<i64: 16, 512>}, {pipeline_mode = #tpu.pipeline_mode<synchronous>, transform_indices = @transform_4, window_bounds = array<i64: 1, 512>}, {pipeline_mode = #tpu.pipeline_mode<synchronous>, transform_indices = @transform_5, window_bounds = array<i64: 1, 512>}, {pipeline_mode = #tpu.pipeline_mode<synchronous>, transform_indices = @transform_6, window_bounds = array<i64: 128, 512>}, {pipeline_mode = #tpu.pipeline_mode<synchronous>, transform_indices = @transform_7, window_bounds = array<i64: 128, 512>}, {transform_indices = @transform_8, window_bounds = array<i64: 3, 8, 128>}, {transform_indices = @transform_9, window_bounds = array<i64: 3, 8, 128>}]} {
    %c0_i32 = arith.constant 0 : i32
    %0 = arith.cmpi eq, %arg0, %c0_i32 : i32
    %1 = arith.extui %0 : i1 to i32
    %c0_i32_0 = arith.constant 0 : i32
    %2 = arith.cmpi ne, %1, %c0_i32_0 : i32
    scf.if %2 {
      %cst_102 = arith.constant 0.000000e+00 : f32
      %268 = vector.broadcast %cst_102 : f32 to vector<8x128xf32>
      %c0_103 = arith.constant 0 : index
      %c0_104 = arith.constant 0 : index
      %269 = vector.load %arg13[%c0_103, %c0_104] : memref<8x128xf32, #tpu.memory_space<vmem>>, vector<8x128xf32>
      tpu.vector_store %arg13[%c0_103, %c0_104], %268 {strides = array<i32>} : memref<8x128xf32, #tpu.memory_space<vmem>>, vector<8x128xf32>,
      %cst_105 = arith.constant 0.000000e+00 : f32
      %270 = vector.broadcast %cst_105 : f32 to vector<8x128xf32>
      %c0_106 = arith.constant 0 : index
      %c0_107 = arith.constant 0 : index
      %271 = vector.load %arg14[%c0_106, %c0_107] : memref<8x128xf32, #tpu.memory_space<vmem>>, vector<8x128xf32>
      tpu.vector_store %arg14[%c0_106, %c0_107], %270 {strides = array<i32>} : memref<8x128xf32, #tpu.memory_space<vmem>>, vector<8x128xf32>,
      %cst_108 = arith.constant 0.000000e+00 : f32
      %272 = vector.broadcast %cst_108 : f32 to vector<8x128xf32>
      %c0_109 = arith.constant 0 : index
      %c0_110 = arith.constant 0 : index
      %273 = vector.load %arg15[%c0_109, %c0_110] : memref<8x128xf32, #tpu.memory_space<vmem>>, vector<8x128xf32>
      tpu.vector_store %arg15[%c0_109, %c0_110], %272 {strides = array<i32>} : memref<8x128xf32, #tpu.memory_space<vmem>>, vector<8x128xf32>,
      %cst_111 = arith.constant 0.000000e+00 : f32
      %274 = vector.broadcast %cst_111 : f32 to vector<8x128xf32>
      %c0_112 = arith.constant 0 : index
      %c0_113 = arith.constant 0 : index
      %275 = vector.load %arg16[%c0_112, %c0_113] : memref<8x128xf32, #tpu.memory_space<vmem>>, vector<8x128xf32>
      tpu.vector_store %arg16[%c0_112, %c0_113], %274 {strides = array<i32>} : memref<8x128xf32, #tpu.memory_space<vmem>>, vector<8x128xf32>,
    } else {
    }
    %c0 = arith.constant 0 : index
    %c0_1 = arith.constant 0 : index
    %c0_2 = arith.constant 0 : index
    %3 = vector.load %arg1[%c0, %c0_1, %c0_2] : memref<3x8x16xbf16, #tpu.memory_space<vmem>>, vector<3x8x16xbf16>
    %4 = vector.shape_cast %3 : vector<3x8x16xbf16> to vector<24x16xbf16>
    %c0_3 = arith.constant 0 : index
    %c0_4 = arith.constant 0 : index
    %c0_5 = arith.constant 0 : index
    %5 = vector.load %arg2[%c0_3, %c0_4, %c0_5] : memref<3x8x16xbf16, #tpu.memory_space<vmem>>, vector<3x8x16xbf16>
    %6 = vector.shape_cast %5 : vector<3x8x16xbf16> to vector<24x16xbf16>
    %c0_6 = arith.constant 0 : index
    %c0_7 = arith.constant 0 : index
    %7 = vector.load %arg3[%c0_6, %c0_7] : memref<16x512xbf16, #tpu.memory_space<vmem>>, vector<16x512xbf16>
    %cst = arith.constant dense<0.000000e+00> : vector<24x512xf32>
    %8 = tpu.matmul %4, %7, %cst {dimension_numbers = #tpu.dot_dimension_numbers<[1], [0], [0], [1], [0, 0, 1, 1], [], []>} : vector<24x16xbf16>, vector<16x512xbf16>, vector<24x512xf32> -> vector<24x512xf32>
    %c0_8 = arith.constant 0 : index
    %c0_9 = arith.constant 0 : index
    %9 = vector.load %arg5[%c0_8, %c0_9] : memref<1x512xf32, #tpu.memory_space<vmem>>, vector<1x512xf32>
    %10 = vector.broadcast %9 : vector<1x512xf32> to vector<24x512xf32>
    %11 = arith.addf %8, %10 : vector<24x512xf32>
    %12 = vector.shape_cast %11 : vector<24x512xf32> to vector<3x8x512xf32>
    %c0_10 = arith.constant 0 : index
    %c0_11 = arith.constant 0 : index
    %c0_12 = arith.constant 0 : index
    %13 = vector.load %arg11[%c0_10, %c0_11, %c0_12] : memref<3x8x512xf32, #tpu.memory_space<vmem>>, vector<3x8x512xf32>
    tpu.vector_store %arg11[%c0_10, %c0_11, %c0_12], %12 {strides = array<i32>} : memref<3x8x512xf32, #tpu.memory_space<vmem>>, vector<3x8x512xf32>,
    %c0_13 = arith.constant 0 : index
    %c0_14 = arith.constant 0 : index
    %14 = vector.load %arg4[%c0_13, %c0_14] : memref<16x512xbf16, #tpu.memory_space<vmem>>, vector<16x512xbf16>
    %cst_15 = arith.constant dense<0.000000e+00> : vector<24x512xf32>
    %15 = tpu.matmul %6, %14, %cst_15 {dimension_numbers = #tpu.dot_dimension_numbers<[1], [0], [0], [1], [0, 0, 1, 1], [], []>} : vector<24x16xbf16>, vector<16x512xbf16>, vector<24x512xf32> -> vector<24x512xf32>
    %c0_16 = arith.constant 0 : index
    %c0_17 = arith.constant 0 : index
    %16 = vector.load %arg6[%c0_16, %c0_17] : memref<1x512xf32, #tpu.memory_space<vmem>>, vector<1x512xf32>
    %17 = vector.broadcast %16 : vector<1x512xf32> to vector<24x512xf32>
    %18 = arith.addf %15, %17 : vector<24x512xf32>
    %19 = vector.shape_cast %18 : vector<24x512xf32> to vector<3x8x512xf32>
    %c0_18 = arith.constant 0 : index
    %c0_19 = arith.constant 0 : index
    %c0_20 = arith.constant 0 : index
    %20 = vector.load %arg12[%c0_18, %c0_19, %c0_20] : memref<3x8x512xf32, #tpu.memory_space<vmem>>, vector<3x8x512xf32>
    tpu.vector_store %arg12[%c0_18, %c0_19, %c0_20], %19 {strides = array<i32>} : memref<3x8x512xf32, #tpu.memory_space<vmem>>, vector<3x8x512xf32>,
    %c0_21 = arith.constant 0 : index
    %c0_22 = arith.constant 0 : index
    %21 = vector.load %arg7[%c0_21, %c0_22] : memref<128x512xbf16, #tpu.memory_space<vmem>>, vector<128x512xbf16>
    %c0_23 = arith.constant 0 : index
    %c0_24 = arith.constant 0 : index
    %22 = vector.load %arg8[%c0_23, %c0_24] : memref<128x512xbf16, #tpu.memory_space<vmem>>, vector<128x512xbf16>
    %c0_25 = arith.constant 0 : index
    %c0_26 = arith.constant 0 : index
    %23 = vector.load %arg13[%c0_25, %c0_26] : memref<8x128xf32, #tpu.memory_space<vmem>>, vector<8x128xf32>
    %c0_27 = arith.constant 0 : index
    %c0_28 = arith.constant 0 : index
    %24 = vector.load %arg14[%c0_27, %c0_28] : memref<8x128xf32, #tpu.memory_space<vmem>>, vector<8x128xf32>
    %c0_29 = arith.constant 0 : index
    %c0_30 = arith.constant 0 : index
    %25 = vector.load %arg15[%c0_29, %c0_30] : memref<8x128xf32, #tpu.memory_space<vmem>>, vector<8x128xf32>
    %c0_31 = arith.constant 0 : index
    %c0_32 = arith.constant 0 : index
    %26 = vector.load %arg16[%c0_31, %c0_32] : memref<8x128xf32, #tpu.memory_space<vmem>>, vector<8x128xf32>
    %c0_i32_33 = arith.constant 0 : i32
    %27 = arith.index_cast %c0_i32_33 : i32 to index
    %c0_34 = arith.constant 0 : index
    %c0_35 = arith.constant 0 : index
    %28 = vector.load %arg11[%27, %c0_34, %c0_35] : memref<3x8x512xf32, #tpu.memory_space<vmem>>, vector<1x8x512xf32>
    %29 = vector.shape_cast %28 : vector<1x8x512xf32> to vector<8x512xf32>
    %30 = arith.truncf %23 : vector<8x128xf32> to vector<8x128xbf16>
    %cst_36 = arith.constant dense<0.000000e+00> : vector<8x512xf32>
    %31 = tpu.matmul %30, %21, %cst_36 {dimension_numbers = #tpu.dot_dimension_numbers<[1], [0], [0], [1], [0, 0, 1, 1], [], []>} : vector<8x128xbf16>, vector<128x512xbf16>, vector<8x512xf32> -> vector<8x512xf32>
    %32 = arith.addf %29, %31 : vector<8x512xf32>
    %33 = vector.extract_strided_slice %32 {offsets = [0, 0], sizes = [8, 128], strides = [1, 1]} : vector<8x512xf32> to vector<8x128xf32>
    %34 = arith.negf %33 : vector<8x128xf32>
    %35 = math.exp %34 : vector<8x128xf32>
    %cst_37 = arith.constant 1.000000e+00 : f32
    %36 = vector.broadcast %cst_37 : f32 to vector<8x128xf32>
    %37 = arith.addf %36, %35 : vector<8x128xf32>
    %38 = arith.divf %36, %37 : vector<8x128xf32>
    %39 = vector.extract_strided_slice %32 {offsets = [0, 128], sizes = [8, 128], strides = [1, 1]} : vector<8x512xf32> to vector<8x128xf32>
    %40 = arith.negf %39 : vector<8x128xf32>
    %41 = math.exp %40 : vector<8x128xf32>
    %cst_38 = arith.constant 1.000000e+00 : f32
    %42 = vector.broadcast %cst_38 : f32 to vector<8x128xf32>
    %43 = arith.addf %42, %41 : vector<8x128xf32>
    %44 = arith.divf %42, %43 : vector<8x128xf32>
    %45 = vector.extract_strided_slice %32 {offsets = [0, 256], sizes = [8, 128], strides = [1, 1]} : vector<8x512xf32> to vector<8x128xf32>
    %46 = math.tanh %45 : vector<8x128xf32>
    %47 = vector.extract_strided_slice %32 {offsets = [0, 384], sizes = [8, 128], strides = [1, 1]} : vector<8x512xf32> to vector<8x128xf32>
    %48 = arith.negf %47 : vector<8x128xf32>
    %49 = math.exp %48 : vector<8x128xf32>
    %cst_39 = arith.constant 1.000000e+00 : f32
    %50 = vector.broadcast %cst_39 : f32 to vector<8x128xf32>
    %51 = arith.addf %50, %49 : vector<8x128xf32>
    %52 = arith.divf %50, %51 : vector<8x128xf32>
    %53 = arith.mulf %44, %24 : vector<8x128xf32>
    %54 = arith.mulf %38, %46 : vector<8x128xf32>
    %55 = arith.addf %53, %54 : vector<8x128xf32>
    %56 = math.tanh %55 : vector<8x128xf32>
    %57 = arith.mulf %52, %56 : vector<8x128xf32>
    %c2_i32 = arith.constant 2 : i32
    %58 = arith.subi %c2_i32, %c0_i32_33 : i32
    %59 = arith.index_cast %58 : i32 to index
    %c0_40 = arith.constant 0 : index
    %c0_41 = arith.constant 0 : index
    %60 = vector.load %arg12[%59, %c0_40, %c0_41] : memref<3x8x512xf32, #tpu.memory_space<vmem>>, vector<1x8x512xf32>
    %61 = vector.shape_cast %60 : vector<1x8x512xf32> to vector<8x512xf32>
    %62 = arith.truncf %25 : vector<8x128xf32> to vector<8x128xbf16>
    %cst_42 = arith.constant dense<0.000000e+00> : vector<8x512xf32>
    %63 = tpu.matmul %62, %22, %cst_42 {dimension_numbers = #tpu.dot_dimension_numbers<[1], [0], [0], [1], [0, 0, 1, 1], [], []>} : vector<8x128xbf16>, vector<128x512xbf16>, vector<8x512xf32> -> vector<8x512xf32>
    %64 = arith.addf %61, %63 : vector<8x512xf32>
    %65 = vector.extract_strided_slice %64 {offsets = [0, 0], sizes = [8, 128], strides = [1, 1]} : vector<8x512xf32> to vector<8x128xf32>
    %66 = arith.negf %65 : vector<8x128xf32>
    %67 = math.exp %66 : vector<8x128xf32>
    %cst_43 = arith.constant 1.000000e+00 : f32
    %68 = vector.broadcast %cst_43 : f32 to vector<8x128xf32>
    %69 = arith.addf %68, %67 : vector<8x128xf32>
    %70 = arith.divf %68, %69 : vector<8x128xf32>
    %71 = vector.extract_strided_slice %64 {offsets = [0, 128], sizes = [8, 128], strides = [1, 1]} : vector<8x512xf32> to vector<8x128xf32>
    %72 = arith.negf %71 : vector<8x128xf32>
    %73 = math.exp %72 : vector<8x128xf32>
    %cst_44 = arith.constant 1.000000e+00 : f32
    %74 = vector.broadcast %cst_44 : f32 to vector<8x128xf32>
    %75 = arith.addf %74, %73 : vector<8x128xf32>
    %76 = arith.divf %74, %75 : vector<8x128xf32>
    %77 = vector.extract_strided_slice %64 {offsets = [0, 256], sizes = [8, 128], strides = [1, 1]} : vector<8x512xf32> to vector<8x128xf32>
    %78 = math.tanh %77 : vector<8x128xf32>
    %79 = vector.extract_strided_slice %64 {offsets = [0, 384], sizes = [8, 128], strides = [1, 1]} : vector<8x512xf32> to vector<8x128xf32>
    %80 = arith.negf %79 : vector<8x128xf32>
    %81 = math.exp %80 : vector<8x128xf32>
    %cst_45 = arith.constant 1.000000e+00 : f32
    %82 = vector.broadcast %cst_45 : f32 to vector<8x128xf32>
    %83 = arith.addf %82, %81 : vector<8x128xf32>
    %84 = arith.divf %82, %83 : vector<8x128xf32>
    %85 = arith.mulf %76, %26 : vector<8x128xf32>
    %86 = arith.mulf %70, %78 : vector<8x128xf32>
    %87 = arith.addf %85, %86 : vector<8x128xf32>
    %88 = math.tanh %87 : vector<8x128xf32>
    %89 = arith.mulf %84, %88 : vector<8x128xf32>
    %c0_i32_46 = arith.constant 0 : i32
    %90 = arith.cmpi eq, %arg0, %c0_i32_46 : i32
    %c1_i32 = arith.constant 1 : i32
    %91 = arith.cmpi slt, %c0_i32_33, %c1_i32 : i32
    %92 = arith.andi %90, %91 : i1
    %93 = arith.select %92, %25, %89 : vector<8x128xf32>
    %94 = arith.select %92, %26, %87 : vector<8x128xf32>
    %95 = arith.truncf %57 : vector<8x128xf32> to vector<8x128xbf16>
    %96 = arith.index_cast %c0_i32_33 : i32 to index
    %c0_47 = arith.constant 0 : index
    %c0_48 = arith.constant 0 : index
    %97 = vector.load %arg9[%96, %c0_47, %c0_48] : memref<3x8x128xbf16, #tpu.memory_space<vmem>>, vector<1x8x128xbf16>
    %98 = vector.shape_cast %97 : vector<1x8x128xbf16> to vector<8x128xbf16>
    %99 = vector.shape_cast %95 : vector<8x128xbf16> to vector<1x8x128xbf16>
    tpu.vector_store %arg9[%96, %c0_47, %c0_48], %99 {strides = array<i32>} : memref<3x8x128xbf16, #tpu.memory_space<vmem>>, vector<1x8x128xbf16>,
    %100 = arith.truncf %93 : vector<8x128xf32> to vector<8x128xbf16>
    %c2_i32_49 = arith.constant 2 : i32
    %101 = arith.subi %c2_i32_49, %c0_i32_33 : i32
    %102 = arith.index_cast %101 : i32 to index
    %c0_50 = arith.constant 0 : index
    %c0_51 = arith.constant 0 : index
    %103 = vector.load %arg10[%102, %c0_50, %c0_51] : memref<3x8x128xbf16, #tpu.memory_space<vmem>>, vector<1x8x128xbf16>
    %104 = vector.shape_cast %103 : vector<1x8x128xbf16> to vector<8x128xbf16>
    %105 = vector.shape_cast %100 : vector<8x128xbf16> to vector<1x8x128xbf16>
    tpu.vector_store %arg10[%102, %c0_50, %c0_51], %105 {strides = array<i32>} : memref<3x8x128xbf16, #tpu.memory_space<vmem>>, vector<1x8x128xbf16>,
    %c1_i32_52 = arith.constant 1 : i32
    %106 = arith.index_cast %c1_i32_52 : i32 to index
    %c0_53 = arith.constant 0 : index
    %c0_54 = arith.constant 0 : index
    %107 = vector.load %arg11[%106, %c0_53, %c0_54] : memref<3x8x512xf32, #tpu.memory_space<vmem>>, vector<1x8x512xf32>
    %108 = vector.shape_cast %107 : vector<1x8x512xf32> to vector<8x512xf32>
    %109 = arith.truncf %57 : vector<8x128xf32> to vector<8x128xbf16>
    %cst_55 = arith.constant dense<0.000000e+00> : vector<8x512xf32>
    %110 = tpu.matmul %109, %21, %cst_55 {dimension_numbers = #tpu.dot_dimension_numbers<[1], [0], [0], [1], [0, 0, 1, 1], [], []>} : vector<8x128xbf16>, vector<128x512xbf16>, vector<8x512xf32> -> vector<8x512xf32>
    %111 = arith.addf %108, %110 : vector<8x512xf32>
    %112 = vector.extract_strided_slice %111 {offsets = [0, 0], sizes = [8, 128], strides = [1, 1]} : vector<8x512xf32> to vector<8x128xf32>
    %113 = arith.negf %112 : vector<8x128xf32>
    %114 = math.exp %113 : vector<8x128xf32>
    %cst_56 = arith.constant 1.000000e+00 : f32
    %115 = vector.broadcast %cst_56 : f32 to vector<8x128xf32>
    %116 = arith.addf %115, %114 : vector<8x128xf32>
    %117 = arith.divf %115, %116 : vector<8x128xf32>
    %118 = vector.extract_strided_slice %111 {offsets = [0, 128], sizes = [8, 128], strides = [1, 1]} : vector<8x512xf32> to vector<8x128xf32>
    %119 = arith.negf %118 : vector<8x128xf32>
    %120 = math.exp %119 : vector<8x128xf32>
    %cst_57 = arith.constant 1.000000e+00 : f32
    %121 = vector.broadcast %cst_57 : f32 to vector<8x128xf32>
    %122 = arith.addf %121, %120 : vector<8x128xf32>
    %123 = arith.divf %121, %122 : vector<8x128xf32>
    %124 = vector.extract_strided_slice %111 {offsets = [0, 256], sizes = [8, 128], strides = [1, 1]} : vector<8x512xf32> to vector<8x128xf32>
    %125 = math.tanh %124 : vector<8x128xf32>
    %126 = vector.extract_strided_slice %111 {offsets = [0, 384], sizes = [8, 128], strides = [1, 1]} : vector<8x512xf32> to vector<8x128xf32>
    %127 = arith.negf %126 : vector<8x128xf32>
    %128 = math.exp %127 : vector<8x128xf32>
    %cst_58 = arith.constant 1.000000e+00 : f32
    %129 = vector.broadcast %cst_58 : f32 to vector<8x128xf32>
    %130 = arith.addf %129, %128 : vector<8x128xf32>
    %131 = arith.divf %129, %130 : vector<8x128xf32>
    %132 = arith.mulf %123, %55 : vector<8x128xf32>
    %133 = arith.mulf %117, %125 : vector<8x128xf32>
    %134 = arith.addf %132, %133 : vector<8x128xf32>
    %135 = math.tanh %134 : vector<8x128xf32>
    %136 = arith.mulf %131, %135 : vector<8x128xf32>
    %c2_i32_59 = arith.constant 2 : i32
    %137 = arith.subi %c2_i32_59, %c1_i32_52 : i32
    %138 = arith.index_cast %137 : i32 to index
    %c0_60 = arith.constant 0 : index
    %c0_61 = arith.constant 0 : index
    %139 = vector.load %arg12[%138, %c0_60, %c0_61] : memref<3x8x512xf32, #tpu.memory_space<vmem>>, vector<1x8x512xf32>
    %140 = vector.shape_cast %139 : vector<1x8x512xf32> to vector<8x512xf32>
    %141 = arith.truncf %93 : vector<8x128xf32> to vector<8x128xbf16>
    %cst_62 = arith.constant dense<0.000000e+00> : vector<8x512xf32>
    %142 = tpu.matmul %141, %22, %cst_62 {dimension_numbers = #tpu.dot_dimension_numbers<[1], [0], [0], [1], [0, 0, 1, 1], [], []>} : vector<8x128xbf16>, vector<128x512xbf16>, vector<8x512xf32> -> vector<8x512xf32>
    %143 = arith.addf %140, %142 : vector<8x512xf32>
    %144 = vector.extract_strided_slice %143 {offsets = [0, 0], sizes = [8, 128], strides = [1, 1]} : vector<8x512xf32> to vector<8x128xf32>
    %145 = arith.negf %144 : vector<8x128xf32>
    %146 = math.exp %145 : vector<8x128xf32>
    %cst_63 = arith.constant 1.000000e+00 : f32
    %147 = vector.broadcast %cst_63 : f32 to vector<8x128xf32>
    %148 = arith.addf %147, %146 : vector<8x128xf32>
    %149 = arith.divf %147, %148 : vector<8x128xf32>
    %150 = vector.extract_strided_slice %143 {offsets = [0, 128], sizes = [8, 128], strides = [1, 1]} : vector<8x512xf32> to vector<8x128xf32>
    %151 = arith.negf %150 : vector<8x128xf32>
    %152 = math.exp %151 : vector<8x128xf32>
    %cst_64 = arith.constant 1.000000e+00 : f32
    %153 = vector.broadcast %cst_64 : f32 to vector<8x128xf32>
    %154 = arith.addf %153, %152 : vector<8x128xf32>
    %155 = arith.divf %153, %154 : vector<8x128xf32>
    %156 = vector.extract_strided_slice %143 {offsets = [0, 256], sizes = [8, 128], strides = [1, 1]} : vector<8x512xf32> to vector<8x128xf32>
    %157 = math.tanh %156 : vector<8x128xf32>
    %158 = vector.extract_strided_slice %143 {offsets = [0, 384], sizes = [8, 128], strides = [1, 1]} : vector<8x512xf32> to vector<8x128xf32>
    %159 = arith.negf %158 : vector<8x128xf32>
    %160 = math.exp %159 : vector<8x128xf32>
    %cst_65 = arith.constant 1.000000e+00 : f32
    %161 = vector.broadcast %cst_65 : f32 to vector<8x128xf32>
    %162 = arith.addf %161, %160 : vector<8x128xf32>
    %163 = arith.divf %161, %162 : vector<8x128xf32>
    %164 = arith.mulf %155, %94 : vector<8x128xf32>
    %165 = arith.mulf %149, %157 : vector<8x128xf32>
    %166 = arith.addf %164, %165 : vector<8x128xf32>
    %167 = math.tanh %166 : vector<8x128xf32>
    %168 = arith.mulf %163, %167 : vector<8x128xf32>
    %c0_i32_66 = arith.constant 0 : i32
    %169 = arith.cmpi eq, %arg0, %c0_i32_66 : i32
    %c1_i32_67 = arith.constant 1 : i32
    %170 = arith.cmpi slt, %c1_i32_52, %c1_i32_67 : i32
    %171 = arith.andi %169, %170 : i1
    %172 = arith.select %171, %93, %168 : vector<8x128xf32>
    %173 = arith.select %171, %94, %166 : vector<8x128xf32>
    %174 = arith.truncf %136 : vector<8x128xf32> to vector<8x128xbf16>
    %175 = arith.index_cast %c1_i32_52 : i32 to index
    %c0_68 = arith.constant 0 : index
    %c0_69 = arith.constant 0 : index
    %176 = vector.load %arg9[%175, %c0_68, %c0_69] : memref<3x8x128xbf16, #tpu.memory_space<vmem>>, vector<1x8x128xbf16>
    %177 = vector.shape_cast %176 : vector<1x8x128xbf16> to vector<8x128xbf16>
    %178 = vector.shape_cast %174 : vector<8x128xbf16> to vector<1x8x128xbf16>
    tpu.vector_store %arg9[%175, %c0_68, %c0_69], %178 {strides = array<i32>} : memref<3x8x128xbf16, #tpu.memory_space<vmem>>, vector<1x8x128xbf16>,
    %179 = arith.truncf %172 : vector<8x128xf32> to vector<8x128xbf16>
    %c2_i32_70 = arith.constant 2 : i32
    %180 = arith.subi %c2_i32_70, %c1_i32_52 : i32
    %181 = arith.index_cast %180 : i32 to index
    %c0_71 = arith.constant 0 : index
    %c0_72 = arith.constant 0 : index
    %182 = vector.load %arg10[%181, %c0_71, %c0_72] : memref<3x8x128xbf16, #tpu.memory_space<vmem>>, vector<1x8x128xbf16>
    %183 = vector.shape_cast %182 : vector<1x8x128xbf16> to vector<8x128xbf16>
    %184 = vector.shape_cast %179 : vector<8x128xbf16> to vector<1x8x128xbf16>
    tpu.vector_store %arg10[%181, %c0_71, %c0_72], %184 {strides = array<i32>} : memref<3x8x128xbf16, #tpu.memory_space<vmem>>, vector<1x8x128xbf16>,
    %c2_i32_73 = arith.constant 2 : i32
    %185 = arith.index_cast %c2_i32_73 : i32 to index
    %c0_74 = arith.constant 0 : index
    %c0_75 = arith.constant 0 : index
    %186 = vector.load %arg11[%185, %c0_74, %c0_75] : memref<3x8x512xf32, #tpu.memory_space<vmem>>, vector<1x8x512xf32>
    %187 = vector.shape_cast %186 : vector<1x8x512xf32> to vector<8x512xf32>
    %188 = arith.truncf %136 : vector<8x128xf32> to vector<8x128xbf16>
    %cst_76 = arith.constant dense<0.000000e+00> : vector<8x512xf32>
    %189 = tpu.matmul %188, %21, %cst_76 {dimension_numbers = #tpu.dot_dimension_numbers<[1], [0], [0], [1], [0, 0, 1, 1], [], []>} : vector<8x128xbf16>, vector<128x512xbf16>, vector<8x512xf32> -> vector<8x512xf32>
    %190 = arith.addf %187, %189 : vector<8x512xf32>
    %191 = vector.extract_strided_slice %190 {offsets = [0, 0], sizes = [8, 128], strides = [1, 1]} : vector<8x512xf32> to vector<8x128xf32>
    %192 = arith.negf %191 : vector<8x128xf32>
    %193 = math.exp %192 : vector<8x128xf32>
    %cst_77 = arith.constant 1.000000e+00 : f32
    %194 = vector.broadcast %cst_77 : f32 to vector<8x128xf32>
    %195 = arith.addf %194, %193 : vector<8x128xf32>
    %196 = arith.divf %194, %195 : vector<8x128xf32>
    %197 = vector.extract_strided_slice %190 {offsets = [0, 128], sizes = [8, 128], strides = [1, 1]} : vector<8x512xf32> to vector<8x128xf32>
    %198 = arith.negf %197 : vector<8x128xf32>
    %199 = math.exp %198 : vector<8x128xf32>
    %cst_78 = arith.constant 1.000000e+00 : f32
    %200 = vector.broadcast %cst_78 : f32 to vector<8x128xf32>
    %201 = arith.addf %200, %199 : vector<8x128xf32>
    %202 = arith.divf %200, %201 : vector<8x128xf32>
    %203 = vector.extract_strided_slice %190 {offsets = [0, 256], sizes = [8, 128], strides = [1, 1]} : vector<8x512xf32> to vector<8x128xf32>
    %204 = math.tanh %203 : vector<8x128xf32>
    %205 = vector.extract_strided_slice %190 {offsets = [0, 384], sizes = [8, 128], strides = [1, 1]} : vector<8x512xf32> to vector<8x128xf32>
    %206 = arith.negf %205 : vector<8x128xf32>
    %207 = math.exp %206 : vector<8x128xf32>
    %cst_79 = arith.constant 1.000000e+00 : f32
    %208 = vector.broadcast %cst_79 : f32 to vector<8x128xf32>
    %209 = arith.addf %208, %207 : vector<8x128xf32>
    %210 = arith.divf %208, %209 : vector<8x128xf32>
    %211 = arith.mulf %202, %134 : vector<8x128xf32>
    %212 = arith.mulf %196, %204 : vector<8x128xf32>
    %213 = arith.addf %211, %212 : vector<8x128xf32>
    %214 = math.tanh %213 : vector<8x128xf32>
    %215 = arith.mulf %210, %214 : vector<8x128xf32>
    %c2_i32_80 = arith.constant 2 : i32
    %216 = arith.subi %c2_i32_80, %c2_i32_73 : i32
    %217 = arith.index_cast %216 : i32 to index
    %c0_81 = arith.constant 0 : index
    %c0_82 = arith.constant 0 : index
    %218 = vector.load %arg12[%217, %c0_81, %c0_82] : memref<3x8x512xf32, #tpu.memory_space<vmem>>, vector<1x8x512xf32>
    %219 = vector.shape_cast %218 : vector<1x8x512xf32> to vector<8x512xf32>
    %220 = arith.truncf %172 : vector<8x128xf32> to vector<8x128xbf16>
    %cst_83 = arith.constant dense<0.000000e+00> : vector<8x512xf32>
    %221 = tpu.matmul %220, %22, %cst_83 {dimension_numbers = #tpu.dot_dimension_numbers<[1], [0], [0], [1], [0, 0, 1, 1], [], []>} : vector<8x128xbf16>, vector<128x512xbf16>, vector<8x512xf32> -> vector<8x512xf32>
    %222 = arith.addf %219, %221 : vector<8x512xf32>
    %223 = vector.extract_strided_slice %222 {offsets = [0, 0], sizes = [8, 128], strides = [1, 1]} : vector<8x512xf32> to vector<8x128xf32>
    %224 = arith.negf %223 : vector<8x128xf32>
    %225 = math.exp %224 : vector<8x128xf32>
    %cst_84 = arith.constant 1.000000e+00 : f32
    %226 = vector.broadcast %cst_84 : f32 to vector<8x128xf32>
    %227 = arith.addf %226, %225 : vector<8x128xf32>
    %228 = arith.divf %226, %227 : vector<8x128xf32>
    %229 = vector.extract_strided_slice %222 {offsets = [0, 128], sizes = [8, 128], strides = [1, 1]} : vector<8x512xf32> to vector<8x128xf32>
    %230 = arith.negf %229 : vector<8x128xf32>
    %231 = math.exp %230 : vector<8x128xf32>
    %cst_85 = arith.constant 1.000000e+00 : f32
    %232 = vector.broadcast %cst_85 : f32 to vector<8x128xf32>
    %233 = arith.addf %232, %231 : vector<8x128xf32>
    %234 = arith.divf %232, %233 : vector<8x128xf32>
    %235 = vector.extract_strided_slice %222 {offsets = [0, 256], sizes = [8, 128], strides = [1, 1]} : vector<8x512xf32> to vector<8x128xf32>
    %236 = math.tanh %235 : vector<8x128xf32>
    %237 = vector.extract_strided_slice %222 {offsets = [0, 384], sizes = [8, 128], strides = [1, 1]} : vector<8x512xf32> to vector<8x128xf32>
    %238 = arith.negf %237 : vector<8x128xf32>
    %239 = math.exp %238 : vector<8x128xf32>
    %cst_86 = arith.constant 1.000000e+00 : f32
    %240 = vector.broadcast %cst_86 : f32 to vector<8x128xf32>
    %241 = arith.addf %240, %239 : vector<8x128xf32>
    %242 = arith.divf %240, %241 : vector<8x128xf32>
    %243 = arith.mulf %234, %173 : vector<8x128xf32>
    %244 = arith.mulf %228, %236 : vector<8x128xf32>
    %245 = arith.addf %243, %244 : vector<8x128xf32>
    %246 = math.tanh %245 : vector<8x128xf32>
    %247 = arith.mulf %242, %246 : vector<8x128xf32>
    %c0_i32_87 = arith.constant 0 : i32
    %248 = arith.cmpi eq, %arg0, %c0_i32_87 : i32
    %c1_i32_88 = arith.constant 1 : i32
    %249 = arith.cmpi slt, %c2_i32_73, %c1_i32_88 : i32
    %250 = arith.andi %248, %249 : i1
    %251 = arith.select %250, %172, %247 : vector<8x128xf32>
    %252 = arith.select %250, %173, %245 : vector<8x128xf32>
    %253 = arith.truncf %215 : vector<8x128xf32> to vector<8x128xbf16>
    %254 = arith.index_cast %c2_i32_73 : i32 to index
    %c0_89 = arith.constant 0 : index
    %c0_90 = arith.constant 0 : index
    %255 = vector.load %arg9[%254, %c0_89, %c0_90] : memref<3x8x128xbf16, #tpu.memory_space<vmem>>, vector<1x8x128xbf16>
    %256 = vector.shape_cast %255 : vector<1x8x128xbf16> to vector<8x128xbf16>
    %257 = vector.shape_cast %253 : vector<8x128xbf16> to vector<1x8x128xbf16>
    tpu.vector_store %arg9[%254, %c0_89, %c0_90], %257 {strides = array<i32>} : memref<3x8x128xbf16, #tpu.memory_space<vmem>>, vector<1x8x128xbf16>,
    %258 = arith.truncf %251 : vector<8x128xf32> to vector<8x128xbf16>
    %c2_i32_91 = arith.constant 2 : i32
    %259 = arith.subi %c2_i32_91, %c2_i32_73 : i32
    %260 = arith.index_cast %259 : i32 to index
    %c0_92 = arith.constant 0 : index
    %c0_93 = arith.constant 0 : index
    %261 = vector.load %arg10[%260, %c0_92, %c0_93] : memref<3x8x128xbf16, #tpu.memory_space<vmem>>, vector<1x8x128xbf16>
    %262 = vector.shape_cast %261 : vector<1x8x128xbf16> to vector<8x128xbf16>
    %263 = vector.shape_cast %258 : vector<8x128xbf16> to vector<1x8x128xbf16>
    tpu.vector_store %arg10[%260, %c0_92, %c0_93], %263 {strides = array<i32>} : memref<3x8x128xbf16, #tpu.memory_space<vmem>>, vector<1x8x128xbf16>,
    %c3_i32 = arith.constant 3 : i32
    %c0_94 = arith.constant 0 : index
    %c0_95 = arith.constant 0 : index
    %264 = vector.load %arg13[%c0_94, %c0_95] : memref<8x128xf32, #tpu.memory_space<vmem>>, vector<8x128xf32>
    tpu.vector_store %arg13[%c0_94, %c0_95], %215 {strides = array<i32>} : memref<8x128xf32, #tpu.memory_space<vmem>>, vector<8x128xf32>,
    %c0_96 = arith.constant 0 : index
    %c0_97 = arith.constant 0 : index
    %265 = vector.load %arg14[%c0_96, %c0_97] : memref<8x128xf32, #tpu.memory_space<vmem>>, vector<8x128xf32>
    tpu.vector_store %arg14[%c0_96, %c0_97], %213 {strides = array<i32>} : memref<8x128xf32, #tpu.memory_space<vmem>>, vector<8x128xf32>,
    %c0_98 = arith.constant 0 : index
    %c0_99 = arith.constant 0 : index
    %266 = vector.load %arg15[%c0_98, %c0_99] : memref<8x128xf32, #tpu.memory_space<vmem>>, vector<8x128xf32>
    tpu.vector_store %arg15[%c0_98, %c0_99], %251 {strides = array<i32>} : memref<8x128xf32, #tpu.memory_space<vmem>>, vector<8x128xf32>,
    %c0_100 = arith.constant 0 : index
    %c0_101 = arith.constant 0 : index
    %267 = vector.load %arg16[%c0_100, %c0_101] : memref<8x128xf32, #tpu.memory_space<vmem>>, vector<8x128xf32>
    tpu.vector_store %arg16[%c0_100, %c0_101], %252 {strides = array<i32>} : memref<8x128xf32, #tpu.memory_space<vmem>>, vector<8x128xf32>,
    return
  }
  func.func @transform_0(%arg0: i32) -> (i32, i32, i32) {
    %c0_i32 = arith.constant 0 : i32
    %c0_i32_0 = arith.constant 0 : i32
    %c0_i32_1 = arith.constant 0 : i32
    return %arg0, %c0_i32, %c0_i32_0 : i32, i32, i32
  }
  func.func @transform_1(%arg0: i32) -> (i32, i32, i32) {
    %c2_i32 = arith.constant 2 : i32
    %0 = arith.subi %c2_i32, %arg0 : i32
    %c0_i32 = arith.constant 0 : i32
    %c0_i32_0 = arith.constant 0 : i32
    %c0_i32_1 = arith.constant 0 : i32
    return %0, %c0_i32, %c0_i32_0 : i32, i32, i32
  }
  func.func @transform_2(%arg0: i32) -> (i32, i32) {
    %c0_i32 = arith.constant 0 : i32
    %c0_i32_0 = arith.constant 0 : i32
    %c0_i32_1 = arith.constant 0 : i32
    return %c0_i32, %c0_i32_0 : i32, i32
  }
  func.func @transform_3(%arg0: i32) -> (i32, i32) {
    %c0_i32 = arith.constant 0 : i32
    %c0_i32_0 = arith.constant 0 : i32
    %c0_i32_1 = arith.constant 0 : i32
    return %c0_i32, %c0_i32_0 : i32, i32
  }
  func.func @transform_4(%arg0: i32) -> (i32, i32) {
    %c0_i32 = arith.constant 0 : i32
    %c0_i32_0 = arith.constant 0 : i32
    %c0_i32_1 = arith.constant 0 : i32
    return %c0_i32, %c0_i32_0 : i32, i32
  }
  func.func @transform_5(%arg0: i32) -> (i32, i32) {
    %c0_i32 = arith.constant 0 : i32
    %c0_i32_0 = arith.constant 0 : i32
    %c0_i32_1 = arith.constant 0 : i32
    return %c0_i32, %c0_i32_0 : i32, i32
  }
  func.func @transform_6(%arg0: i32) -> (i32, i32) {
    %c0_i32 = arith.constant 0 : i32
    %c0_i32_0 = arith.constant 0 : i32
    %c0_i32_1 = arith.constant 0 : i32
    return %c0_i32, %c0_i32_0 : i32, i32
  }
  func.func @transform_7(%arg0: i32) -> (i32, i32) {
    %c0_i32 = arith.constant 0 : i32
    %c0_i32_0 = arith.constant 0 : i32
    %c0_i32_1 = arith.constant 0 : i32
    return %c0_i32, %c0_i32_0 : i32, i32
  }
  func.func @transform_8(%arg0: i32) -> (i32, i32, i32) {
    %c0_i32 = arith.constant 0 : i32
    %c0_i32_0 = arith.constant 0 : i32
    %c0_i32_1 = arith.constant 0 : i32
    return %arg0, %c0_i32, %c0_i32_0 : i32, i32, i32
  }
  func.func @transform_9(%arg0: i32) -> (i32, i32, i32) {
    %c2_i32 = arith.constant 2 : i32
    %0 = arith.subi %c2_i32, %arg0 : i32
    %c0_i32 = arith.constant 0 : i32
    %c0_i32_0 = arith.constant 0 : i32
    %c0_i32_1 = arith.constant 0 : i32
    return %0, %c0_i32, %c0_i32_0 : i32, i32, i32
  }
}

</mosaic_0001>

<llo_original>
// kernel: tpu_custom_call.1
$region0: #{tpu_custom_call.1}
  #allocation0 [shape = 'u32[]', space=smem, size = 0x4, offset = 0x4, fixed_abs, tag = 'smem constant byte address 0x4 - core index']
  #allocation1 [shape = 'u32[144,128]{1,0:T(1,128)}', space=vmem, size = 0x12000, scoped, tag = 'internal scratch']
  #allocation2 [shape = 'f32[3,8,512]{2,1,0:T(8,128)}', space=vmem, size = 0xc000, scoped, tag = 'scratch operand']
  #allocation3 [shape = 'f32[3,8,512]{2,1,0:T(8,128)}', space=vmem, size = 0xc000, scoped, tag = 'scratch operand']
  #allocation4 [shape = 'f32[8,128]{1,0:T(8,128)}', space=vmem, size = 0x1000, scoped, tag = 'scratch operand']
  #allocation5 [shape = 'f32[8,128]{1,0:T(8,128)}', space=vmem, size = 0x1000, scoped, tag = 'scratch operand']
  #allocation6 [shape = 'f32[8,128]{1,0:T(8,128)}', space=vmem, size = 0x1000, scoped, tag = 'scratch operand']
  #allocation7 [shape = 'f32[8,128]{1,0:T(8,128)}', space=vmem, size = 0x1000, scoped, tag = 'scratch operand']
  %s0 = inlined_call_operand.hbm [shape: bf16[9,8,16], index: 0, kind: input, shape index: {}]
  %s1 = inlined_call_operand.hbm [shape: bf16[9,8,16], index: 1, kind: input, shape index: {}]
  %s2 = inlined_call_operand.hbm [shape: bf16[16,512], index: 2, kind: input, shape index: {}]
  %s3 = inlined_call_operand.hbm [shape: bf16[16,512], index: 3, kind: input, shape index: {}]
  %s4 = inlined_call_operand.vmem [shape: f32[1,512], index: 4, kind: input, shape index: {}]
  %s5 = inlined_call_operand.vmem [shape: f32[1,512], index: 5, kind: input, shape index: {}]
  %s6 = inlined_call_operand.hbm [shape: bf16[128,512], index: 6, kind: input, shape index: {}]
  %s7 = inlined_call_operand.hbm [shape: bf16[128,512], index: 7, kind: input, shape index: {}]
  %s8 = inlined_call_operand.hbm [shape: bf16[9,8,128], index: 8, kind: output, shape index: {0}]
  %s9 = inlined_call_operand.hbm [shape: bf16[9,8,128], index: 9, kind: output, shape index: {1}]
  %10 = xla_tuple %s8, %s9
  %s11 = sld [smem:[#allocation0]]
  $region101: #{tpu_custom_call.1} parent=0
    _
  %s13 = ssub.s32 1, %s11
  %s14 = scalar_select 0, %s13, %s11
  $region1: #{tpu_custom_call.1} parent=0
    #allocation8 [shape = 'u8[12288]{0}', space=vmem, size = 0x3000, scoped, tag = 'input window, operand 0']
    #allocation9 [shape = 's32[2]{0}', space=sflag, size = 0x8, scoped, tag = 'scoped memory for tpu_custom_call.1']
    #allocation10 [shape = 's32[2]{0}', space=sflag, size = 0x8, scoped, tag = 'scoped memory for tpu_custom_call.1']
    #allocation11 [shape = 'u8[12288]{0}', space=vmem, size = 0x3000, scoped, tag = 'input window, operand 1']
    #allocation12 [shape = 's32[2]{0}', space=sflag, size = 0x8, scoped, tag = 'scoped memory for tpu_custom_call.1']
    #allocation13 [shape = 'u8[16384]{0}', space=vmem, size = 0x4000, scoped, tag = 'input window, operand 2, single buffered']
    #allocation14 [shape = 'u8[16384]{0}', space=vmem, size = 0x4000, scoped, tag = 'input window, operand 3, single buffered']
    #allocation15 [shape = 's32[1]{0}', space=sflag, size = 0x4, scoped, tag = 'scoped memory for tpu_custom_call.1']
    #allocation16 [shape = 'u8[131072]{0}', space=vmem, size = 0x20000, scoped, tag = 'input window, operand 6, single buffered']
    #allocation17 [shape = 'u8[131072]{0}', space=vmem, size = 0x20000, scoped, tag = 'input window, operand 7, single buffered']
    #allocation18 [shape = 's32[1]{0}', space=sflag, size = 0x4, scoped, tag = 'scoped memory for tpu_custom_call.1']
    #allocation19 [shape = 'u8[12288]{0}', space=vmem, size = 0x3000, scoped, tag = 'output window, operand 0']
    #allocation20 [shape = 'u8[12288]{0}', space=vmem, size = 0x3000, scoped, tag = 'output window, operand 1']
    #allocation21 [shape = 's32[2]{0}', space=sflag, size = 0x8, scoped, tag = 'scoped memory for tpu_custom_call.1']
    %15 = vsyncpa [#allocation9], 0
    %s16 = scalar_lea.sflag [#allocation9], 1
    %17 = vsyncpa %s16, 0
    %18 = vsyncpa [#allocation12], 0
    %s19 = scalar_lea.sflag [#allocation12], 1
    %20 = vsyncpa %s19, 0
    %21 = vsyncpa [#allocation15], 0
    %22 = vsyncpa [#allocation18], 0
    %23 = vsyncpa [#allocation10], 0
    %s24 = scalar_lea.sflag [#allocation10], 1
    %25 = vsyncpa %s24, 0
    %26 = vsyncpa [#allocation21], 0
    %s27 = scalar_lea.sflag [#allocation21], 1
    %28 = vsyncpa %s27, 0
    loop: start=0, step=1, limit=5
    $region2: #{tpu_custom_call.1} parent=1 // loop_pre_header
      _
    $region3: #{tpu_custom_call.1} parent=1 // loop_header
      %s30 = sphi 0, %s34
      %p31 = scmp.ge.s32.totalorder %s30, 5
      %s40 = sphi 0, %s42
      %s43 = sphi 0, %s40
      %s44 = sphi 0, %s43
      %s60 = sphi 0, %s44
      %s68 = sphi 0, %s70
      %s71 = sphi 0, %s68
      %s72 = sphi 0, %s71
      %s88 = sphi 0, %s72
      %s92 = sphi 0, %s92
      %s94 = sphi 0, %s92
      %s95 = sphi 0, %s94
      %s109 = sphi 0, %s95
      %s113 = sphi 0, %s113
      %s115 = sphi 0, %s113
      %s116 = sphi 0, %s115
      %s130 = sphi 0, %s116
      %s134 = sphi 0, %s134
      %s136 = sphi 0, %s134
      %s137 = sphi 0, %s136
      %s151 = sphi 0, %s137
      %s155 = sphi 0, %s155
      %s157 = sphi 0, %s155
      %s158 = sphi 0, %s157
      %s172 = sphi 0, %s158
      %s176 = sphi 0, %s176
      %s178 = sphi 0, %s176
      %s179 = sphi 0, %s178
      %s193 = sphi 0, %s179
      %s197 = sphi 0, %s197
      %s199 = sphi 0, %s197
      %s200 = sphi 0, %s199
      %s214 = sphi 0, %s200
      %s220 = sphi 0, %s222
      %s223 = sphi 0, %s220
      %s224 = sphi 0, %s223
      %s240 = sphi 0, %s224
      %s248 = sphi 0, %s250
      %s251 = sphi 0, %s248
      %s252 = sphi 0, %s251
      %s268 = sphi 0, %s252
    $region4: #{tpu_custom_call.1} parent=1 // loop_header_branch
      %33 = sbr.rel (%p31) target = $region8
    $region5: #{tpu_custom_call.1} parent=1 // loop_body
      %s35 = ssub.s32 %s30, 1
      %s36 = ssub.s32 %s30, 2
      %s37 = sadd.s32 %s30, 1
      %s38 = ssub.s32 %s30, %s37
      %p39 = scmp.eq.s32.totalorder %s38, 0
      %s41 = sadd.s32 %s40, 1
      %s42 = scalar_select %p39, %s40, %s41
      %p45 = pneg %p39
      %p46 = scmp.eq.s32.totalorder %s30, 2
      %p47 = por %p45, %p46
      %p48 = scmp.ne.s32.totalorder %s40, %s43
      %p49 = scmp.eq.s32.totalorder %s30, 0
      %p50 = por %p48, %p49
      %p51 = scmp.ne.s32.totalorder %s40, %s43
      %p52 = scmp.eq.s32.totalorder %s35, 2
      %p53 = por %p51, %p52
      %p54 = scmp.ne.s32.totalorder %s43, %s44
      %p55 = scmp.eq.s32.totalorder %s35, 0
      %p56 = por %p54, %p55
      %p57 = scmp.ne.s32.totalorder %s43, %s44
      %p58 = scmp.eq.s32.totalorder %s36, 2
      %p59 = por %p57, %p58
      %p61 = scmp.ne.s32.totalorder %s44, %s60
      %p62 = scmp.eq.s32.totalorder %s36, 0
      %p63 = por %p61, %p62
      %s64 = ssub.s32 2, %s30
      %s65 = ssub.s32 2, %s37
      %s66 = ssub.s32 %s64, %s65
      %p67 = scmp.eq.s32.totalorder %s66, 0
      %s69 = sadd.s32 %s68, 1
      %s70 = scalar_select %p67, %s68, %s69
      %p73 = pneg %p67
      %p74 = scmp.eq.s32.totalorder %s30, 2
      %p75 = por %p73, %p74
      %p76 = scmp.ne.s32.totalorder %s68, %s71
      %p77 = scmp.eq.s32.totalorder %s30, 0
      %p78 = por %p76, %p77
      %p79 = scmp.ne.s32.totalorder %s68, %s71
      %p80 = scmp.eq.s32.totalorder %s35, 2
      %p81 = por %p79, %p80
      %p82 = scmp.ne.s32.totalorder %s71, %s72
      %p83 = scmp.eq.s32.totalorder %s35, 0
      %p84 = por %p82, %p83
      %p85 = scmp.ne.s32.totalorder %s71, %s72
      %p86 = scmp.eq.s32.totalorder %s36, 2
      %p87 = por %p85, %p86
      %p89 = scmp.ne.s32.totalorder %s72, %s88
      %p90 = scmp.eq.s32.totalorder %s36, 0
      %p91 = por %p89, %p90
      %s93 = sadd.s32 %s92, 1
      %p96 = scmp.eq.s32.totalorder %s30, 2
      %p97 = scmp.ne.s32.totalorder %s92, %s94
      %p98 = scmp.eq.s32.totalorder %s30, 0
      %p99 = por %p97, %p98
      %p100 = scmp.ne.s32.totalorder %s92, %s94
      %p101 = scmp.eq.s32.totalorder %s35, 2
      %p102 = por %p100, %p101
      %p103 = scmp.ne.s32.totalorder %s94, %s95
      %p104 = scmp.eq.s32.totalorder %s35, 0
      %p105 = por %p103, %p104
      %p106 = scmp.ne.s32.totalorder %s94, %s95
      %p107 = scmp.eq.s32.totalorder %s36, 2
      %p108 = por %p106, %p107
      %p110 = scmp.ne.s32.totalorder %s95, %s109
      %p111 = scmp.eq.s32.totalorder %s36, 0
      %p112 = por %p110, %p111
      %s114 = sadd.s32 %s113, 1
      %p117 = scmp.eq.s32.totalorder %s30, 2
      %p118 = scmp.ne.s32.totalorder %s113, %s115
      %p119 = scmp.eq.s32.totalorder %s30, 0
      %p120 = por %p118, %p119
      %p121 = scmp.ne.s32.totalorder %s113, %s115
      %p122 = scmp.eq.s32.totalorder %s35, 2
      %p123 = por %p121, %p122
      %p124 = scmp.ne.s32.totalorder %s115, %s116
      %p125 = scmp.eq.s32.totalorder %s35, 0
      %p126 = por %p124, %p125
      %p127 = scmp.ne.s32.totalorder %s115, %s116
      %p128 = scmp.eq.s32.totalorder %s36, 2
      %p129 = por %p127, %p128
      %p131 = scmp.ne.s32.totalorder %s116, %s130
      %p132 = scmp.eq.s32.totalorder %s36, 0
      %p133 = por %p131, %p132
      %s135 = sadd.s32 %s134, 1
      %p138 = scmp.eq.s32.totalorder %s30, 2
      %p139 = scmp.ne.s32.totalorder %s134, %s136
      %p140 = scmp.eq.s32.totalorder %s30, 0
      %p141 = por %p139, %p140
      %p142 = scmp.ne.s32.totalorder %s134, %s136
      %p143 = scmp.eq.s32.totalorder %s35, 2
      %p144 = por %p142, %p143
      %p145 = scmp.ne.s32.totalorder %s136, %s137
      %p146 = scmp.eq.s32.totalorder %s35, 0
      %p147 = por %p145, %p146
      %p148 = scmp.ne.s32.totalorder %s136, %s137
      %p149 = scmp.eq.s32.totalorder %s36, 2
      %p150 = por %p148, %p149
      %p152 = scmp.ne.s32.totalorder %s137, %s151
      %p153 = scmp.eq.s32.totalorder %s36, 0
      %p154 = por %p152, %p153
      %s156 = sadd.s32 %s155, 1
      %p159 = scmp.eq.s32.totalorder %s30, 2
      %p160 = scmp.ne.s32.totalorder %s155, %s157
      %p161 = scmp.eq.s32.totalorder %s30, 0
      %p162 = por %p160, %p161
      %p163 = scmp.ne.s32.totalorder %s155, %s157
      %p164 = scmp.eq.s32.totalorder %s35, 2
      %p165 = por %p163, %p164
      %p166 = scmp.ne.s32.totalorder %s157, %s158
      %p167 = scmp.eq.s32.totalorder %s35, 0
      %p168 = por %p166, %p167
      %p169 = scmp.ne.s32.totalorder %s157, %s158
      %p170 = scmp.eq.s32.totalorder %s36, 2
      %p171 = por %p169, %p170
      %p173 = scmp.ne.s32.totalorder %s158, %s172
      %p174 = scmp.eq.s32.totalorder %s36, 0
      %p175 = por %p173, %p174
      %s177 = sadd.s32 %s176, 1
      %p180 = scmp.eq.s32.totalorder %s30, 2
      %p181 = scmp.ne.s32.totalorder %s176, %s178
      %p182 = scmp.eq.s32.totalorder %s30, 0
      %p183 = por %p181, %p182
      %p184 = scmp.ne.s32.totalorder %s176, %s178
      %p185 = scmp.eq.s32.totalorder %s35, 2
      %p186 = por %p184, %p185
      %p187 = scmp.ne.s32.totalorder %s178, %s179
      %p188 = scmp.eq.s32.totalorder %s35, 0
      %p189 = por %p187, %p188
      %p190 = scmp.ne.s32.totalorder %s178, %s179
      %p191 = scmp.eq.s32.totalorder %s36, 2
      %p192 = por %p190, %p191
      %p194 = scmp.ne.s32.totalorder %s179, %s193
      %p195 = scmp.eq.s32.totalorder %s36, 0
      %p196 = por %p194, %p195
      %s198 = sadd.s32 %s197, 1
      %p201 = scmp.eq.s32.totalorder %s30, 2
      %p202 = scmp.ne.s32.totalorder %s197, %s199
      %p203 = scmp.eq.s32.totalorder %s30, 0
      %p204 = por %p202, %p203
      %p205 = scmp.ne.s32.totalorder %s197, %s199
      %p206 = scmp.eq.s32.totalorder %s35, 2
      %p207 = por %p205, %p206
      %p208 = scmp.ne.s32.totalorder %s199, %s200
      %p209 = scmp.eq.s32.totalorder %s35, 0
      %p210 = por %p208, %p209
      %p211 = scmp.ne.s32.totalorder %s199, %s200
      %p212 = scmp.eq.s32.totalorder %s36, 2
      %p213 = por %p211, %p212
      %p215 = scmp.ne.s32.totalorder %s200, %s214
      %p216 = scmp.eq.s32.totalorder %s36, 0
      %p217 = por %p215, %p216
      %s218 = ssub.s32 %s30, %s37
      %p219 = scmp.eq.s32.totalorder %s218, 0
      %s221 = sadd.s32 %s220, 1
      %s222 = scalar_select %p219, %s220, %s221
      %p225 = pneg %p219
      %p226 = scmp.eq.s32.totalorder %s30, 2
      %p227 = por %p225, %p226
      %p228 = scmp.ne.s32.totalorder %s220, %s223
      %p229 = scmp.eq.s32.totalorder %s30, 0
      %p230 = por %p228, %p229
      %p231 = scmp.ne.s32.totalorder %s220, %s223
      %p232 = scmp.eq.s32.totalorder %s35, 2
      %p233 = por %p231, %p232
      %p234 = scmp.ne.s32.totalorder %s223, %s224
      %p235 = scmp.eq.s32.totalorder %s35, 0
      %p236 = por %p234, %p235
      %p237 = scmp.ne.s32.totalorder %s223, %s224
      %p238 = scmp.eq.s32.totalorder %s36, 2
      %p239 = por %p237, %p238
      %p241 = scmp.ne.s32.totalorder %s224, %s240
      %p242 = scmp.eq.s32.totalorder %s36, 0
      %p243 = por %p241, %p242
      %s244 = ssub.s32 2, %s30
      %s245 = ssub.s32 2, %s37
      %s246 = ssub.s32 %s244, %s245
      %p247 = scmp.eq.s32.totalorder %s246, 0
      %s249 = sadd.s32 %s248, 1
      %s250 = scalar_select %p247, %s248, %s249
      %p253 = pneg %p247
      %p254 = scmp.eq.s32.totalorder %s30, 2
      %p255 = por %p253, %p254
      %p256 = scmp.ne.s32.totalorder %s248, %s251
      %p257 = scmp.eq.s32.totalorder %s30, 0
      %p258 = por %p256, %p257
      %p259 = scmp.ne.s32.totalorder %s248, %s251
      %p260 = scmp.eq.s32.totalorder %s35, 2
      %p261 = por %p259, %p260
      %p262 = scmp.ne.s32.totalorder %s251, %s252
      %p263 = scmp.eq.s32.totalorder %s35, 0
      %p264 = por %p262, %p263
      %p265 = scmp.ne.s32.totalorder %s251, %s252
      %p266 = scmp.eq.s32.totalorder %s36, 2
      %p267 = por %p265, %p266
      %p269 = scmp.ne.s32.totalorder %s252, %s268
      %p270 = scmp.eq.s32.totalorder %s36, 0
      %p271 = por %p269, %p270
      %p272 = scmp.le.s32.totalorder 1, %s30
      %p273 = scmp.lt.s32.totalorder %s30, 4
      %p274 = pnand %p272, %p273
      %p275 = pneg %p274
      // Predicated region
      $region9: #{tpu_custom_call.1} parent=5 // pred_check
        _
      $region10: #{tpu_custom_call.1} parent=5 // pred_check_branch
        %277 = sbr.rel (%p274) target = $region12
      $region11: #{tpu_custom_call.1} parent=5 // pred_region
        %s278 = ssub.s32 %s30, 1
        // Predicated region
        $region13: #{tpu_custom_call.1} parent=11 // pred_check
          %p279 = pneg %p105
        $region14: #{tpu_custom_call.1} parent=11 // pred_check_branch
          %281 = sbr.rel (%p279) target = $region16
        $region15: #{tpu_custom_call.1} parent=11 // pred_region
          %s283 = ssub.s32 512, 512
          %284 = vsyncadd [#allocation12], %s283
          %s285 = sshll.u32 [#allocation13], 4
          %s286 = int_to_ptr.vmem [resolvable:$true] %s285
          %291 = dma.hbm_to_vmem [thread:$0]  %s2, 512, %s286, [#allocation12], 256, 256, 16
        $region16: #{tpu_custom_call.1} parent=11 // pred_fallthru
          _
        // Predicated region
        $region17: #{tpu_custom_call.1} parent=11 // pred_check
          %p292 = pneg %p126
        $region18: #{tpu_custom_call.1} parent=11 // pred_check_branch
          %294 = sbr.rel (%p292) target = $region20
        $region19: #{tpu_custom_call.1} parent=11 // pred_region
          %s296 = ssub.s32 512, 512
          %297 = vsyncadd [#allocation15], %s296
          %s298 = sshll.u32 [#allocation14], 4
          %s299 = int_to_ptr.vmem [resolvable:$true] %s298
          %304 = dma.hbm_to_vmem [thread:$0]  %s3, 512, %s299, [#allocation15], 256, 256, 16
        $region20: #{tpu_custom_call.1} parent=11 // pred_fallthru
          _
        // Predicated region
        $region21: #{tpu_custom_call.1} parent=11 // pred_check
          %p305 = pneg %p147
        $region22: #{tpu_custom_call.1} parent=11 // pred_check_branch
          %307 = sbr.rel (%p305) target = $region24
        $region23: #{tpu_custom_call.1} parent=11 // pred_region
          _
        $region24: #{tpu_custom_call.1} parent=11 // pred_fallthru
          _
        // Predicated region
        $region25: #{tpu_custom_call.1} parent=11 // pred_check
          %p308 = pneg %p168
        $region26: #{tpu_custom_call.1} parent=11 // pred_check_branch
          %310 = sbr.rel (%p308) target = $region28
        $region27: #{tpu_custom_call.1} parent=11 // pred_region
          _
        $region28: #{tpu_custom_call.1} parent=11 // pred_fallthru
          _
        // Predicated region
        $region29: #{tpu_custom_call.1} parent=11 // pred_check
          %p311 = pneg %p189
        $region30: #{tpu_custom_call.1} parent=11 // pred_check_branch
          %313 = sbr.rel (%p311) target = $region32
        $region31: #{tpu_custom_call.1} parent=11 // pred_region
          %s315 = ssub.s32 4096, 4096
          %316 = vsyncadd [#allocation15], %s315
          %s317 = sshll.u32 [#allocation16], 4
          %s318 = int_to_ptr.vmem [resolvable:$true] %s317
          %323 = dma.hbm_to_vmem [thread:$0]  %s6, 4096, %s318, [#allocation15], 256, 256, 16
        $region32: #{tpu_custom_call.1} parent=11 // pred_fallthru
          _
        // Predicated region
        $region33: #{tpu_custom_call.1} parent=11 // pred_check
          %p324 = pneg %p210
        $region34: #{tpu_custom_call.1} parent=11 // pred_check_branch
          %326 = sbr.rel (%p324) target = $region36
        $region35: #{tpu_custom_call.1} parent=11 // pred_region
          %s328 = ssub.s32 4096, 4096
          %329 = vsyncadd [#allocation18], %s328
          %s330 = sshll.u32 [#allocation17], 4
          %s331 = int_to_ptr.vmem [resolvable:$true] %s330
          %336 = dma.hbm_to_vmem [thread:$0]  %s7, 4096, %s331, [#allocation18], 256, 256, 16
        $region36: #{tpu_custom_call.1} parent=11 // pred_fallthru
          _
      $region12: #{tpu_custom_call.1} parent=5 // pred_fallthru
        _
      %p337 = scmp.lt.s32.totalorder %s30, 3
      // Predicated region
      $region37: #{tpu_custom_call.1} parent=5 // pred_check
        %p338 = pneg %p337
      $region38: #{tpu_custom_call.1} parent=5 // pred_check_branch
        %340 = sbr.rel (%p338) target = $region40
      $region39: #{tpu_custom_call.1} parent=5 // pred_region
        // Predicated region
        $region41: #{tpu_custom_call.1} parent=39 // pred_check
          %p341 = pneg %p50
        $region42: #{tpu_custom_call.1} parent=39 // pred_check_branch
          %343 = sbr.rel (%p341) target = $region44
        $region43: #{tpu_custom_call.1} parent=39 // pred_region
          %s344 = sand.u32 %s40, 1
          %s345 = scalar_lea.sflag [#allocation9], %s344
          %s346 = sand.u32 %s40, 1
          %s347 = smul.addr %s346, 12
          %s348 = scalar_lea.vmem [#allocation8], %s347
          %s349 = smul.u32 3, %s30
          %s351 = ssub.s32 192, 192
          %352 = vsyncadd %s345, %s351
          %s353 = smul.addr %s349, 64
          %s354 = scalar_lea.hbm %s0, %s353
          %s355 = sshll.u32 %s348, 4
          %s356 = int_to_ptr.vmem [resolvable:$true] %s355
          %361 = dma.hbm_to_vmem [thread:$0]  %s354, 192, %s356, %s345, 64, 64, 4
        $region44: #{tpu_custom_call.1} parent=39 // pred_fallthru
          _
        // Predicated region
        $region45: #{tpu_custom_call.1} parent=39 // pred_check
          %p362 = pneg %p78
        $region46: #{tpu_custom_call.1} parent=39 // pred_check_branch
          %364 = sbr.rel (%p362) target = $region48
        $region47: #{tpu_custom_call.1} parent=39 // pred_region
          %s365 = sand.u32 %s30, 1
          %s366 = scalar_lea.sflag [#allocation12], %s365
          %s367 = sand.u32 %s68, 1
          %s368 = smul.addr %s367, 12
          %s369 = scalar_lea.vmem [#allocation11], %s368
          %s370 = ssub.s32 2, %s30
          %s371 = smul.u32 3, %s370
          %s373 = ssub.s32 192, 192
          %374 = vsyncadd %s366, %s373
          %s375 = smul.addr %s371, 64
          %s376 = scalar_lea.hbm %s1, %s375
          %s377 = sshll.u32 %s369, 4
          %s378 = int_to_ptr.vmem [resolvable:$true] %s377
          %383 = dma.hbm_to_vmem [thread:$0]  %s376, 192, %s378, %s366, 64, 64, 4
        $region48: #{tpu_custom_call.1} parent=39 // pred_fallthru
          _
      $region40: #{tpu_custom_call.1} parent=5 // pred_fallthru
        _
      %p384 = scmp.le.s32.totalorder 1, %s30
      %p385 = scmp.lt.s32.totalorder %s30, 4
      %p386 = pnand %p384, %p385
      %p387 = pneg %p386
      // Predicated region
      $region49: #{tpu_custom_call.1} parent=5 // pred_check
        _
      $region50: #{tpu_custom_call.1} parent=5 // pred_check_branch
        %389 = sbr.rel (%p386) target = $region52
      $region51: #{tpu_custom_call.1} parent=5 // pred_region
        %s390 = ssub.s32 %s30, 1
        %s391 = sand.u32 %s43, 1
        %s392 = scalar_lea.sflag [#allocation9], %s391
        %s393 = sand.u32 %s43, 1
        %s394 = smul.addr %s393, 12
        %s395 = scalar_lea.vmem [#allocation8], %s394
        // Predicated region
        $region53: #{tpu_custom_call.1} parent=51 // pred_check
          %p396 = pneg %p56
        $region54: #{tpu_custom_call.1} parent=51 // pred_check_branch
          %398 = sbr.rel (%p396) target = $region56
        $region55: #{tpu_custom_call.1} parent=51 // pred_region
          %399 = dma.done %s392, 192
        $region56: #{tpu_custom_call.1} parent=51 // pred_fallthru
          _
        %s400 = sand.u32 %s35, 1
        %s401 = scalar_lea.sflag [#allocation12], %s400
        %s402 = sand.u32 %s71, 1
        %s403 = smul.addr %s402, 12
        %s404 = scalar_lea.vmem [#allocation11], %s403
        // Predicated region
        $region57: #{tpu_custom_call.1} parent=51 // pred_check
          %p405 = pneg %p84
        $region58: #{tpu_custom_call.1} parent=51 // pred_check_branch
          %407 = sbr.rel (%p405) target = $region60
        $region59: #{tpu_custom_call.1} parent=51 // pred_region
          %408 = dma.done %s401, 192
        $region60: #{tpu_custom_call.1} parent=51 // pred_fallthru
          _
        // Predicated region
        $region61: #{tpu_custom_call.1} parent=51 // pred_check
          %p409 = pneg %p105
        $region62: #{tpu_custom_call.1} parent=51 // pred_check_branch
          %411 = sbr.rel (%p409) target = $region64
        $region63: #{tpu_custom_call.1} parent=51 // pred_region
          %412 = dma.done [#allocation12], 512
        $region64: #{tpu_custom_call.1} parent=51 // pred_fallthru
          _
        // Predicated region
        $region65: #{tpu_custom_call.1} parent=51 // pred_check
          %p413 = pneg %p126
        $region66: #{tpu_custom_call.1} parent=51 // pred_check_branch
          %415 = sbr.rel (%p413) target = $region68
        $region67: #{tpu_custom_call.1} parent=51 // pred_region
          %416 = dma.done [#allocation15], 512
        $region68: #{tpu_custom_call.1} parent=51 // pred_fallthru
          _
        // Predicated region
        $region69: #{tpu_custom_call.1} parent=51 // pred_check
          %p417 = pneg %p189
        $region70: #{tpu_custom_call.1} parent=51 // pred_check_branch
          %419 = sbr.rel (%p417) target = $region72
        $region71: #{tpu_custom_call.1} parent=51 // pred_region
          %420 = dma.done [#allocation15], 4096
        $region72: #{tpu_custom_call.1} parent=51 // pred_fallthru
          _
        // Predicated region
        $region73: #{tpu_custom_call.1} parent=51 // pred_check
          %p421 = pneg %p210
        $region74: #{tpu_custom_call.1} parent=51 // pred_check_branch
          %423 = sbr.rel (%p421) target = $region76
        $region75: #{tpu_custom_call.1} parent=51 // pred_region
          %424 = dma.done [#allocation18], 4096
        $region76: #{tpu_custom_call.1} parent=51 // pred_fallthru
          _
        %s425 = sand.u32 %s43, 1
        %s426 = scalar_lea.sflag [#allocation9], %s425
        %s427 = sand.u32 %s43, 1
        %s428 = smul.addr %s427, 12
        %s429 = scalar_lea.vmem [#allocation8], %s428
        %p430 = pneg %p56
        %p431 = pneg %p53
        %s432 = sand.u32 %s35, 1
        %s433 = scalar_lea.sflag [#allocation12], %s432
        %s434 = sand.u32 %s71, 1
        %s435 = smul.addr %s434, 12
        %s436 = scalar_lea.vmem [#allocation11], %s435
        %p437 = pneg %p84
        %p438 = pneg %p81
        %p439 = pneg %p105
        %p440 = pneg %p102
        %p441 = pneg %p126
        %p442 = pneg %p123
        %p443 = pneg %p147
        %p444 = pneg %p144
        %p445 = pneg %p168
        %p446 = pneg %p165
        %p447 = pneg %p189
        %p448 = pneg %p186
        %p449 = pneg %p210
        %p450 = pneg %p207
        %p451 = pneg %p236
        %p452 = pneg %p233
        %s453 = sand.u32 %s223, 1
        %s454 = scalar_lea.sflag [#allocation10], %s453
        %s455 = sand.u32 %s223, 1
        %s456 = smul.addr %s455, 12
        %s457 = scalar_lea.vmem [#allocation19], %s456
        %p458 = pneg %p264
        %p459 = pneg %p261
        %s460 = sand.u32 %s251, 1
        %s461 = scalar_lea.sflag [#allocation21], %s460
        %s462 = sand.u32 %s251, 1
        %s463 = smul.addr %s462, 12
        %s464 = scalar_lea.vmem [#allocation20], %s463
        %s465 = smul.u32 3, %s35
        %s466 = ssub.s32 2, %s35
        %s467 = smul.u32 3, %s466
        %s468 = smul.u32 3, %s35
        %s469 = ssub.s32 2, %s35
        %s470 = smul.u32 3, %s469
        %p472 = scmp.eq.s32.totalorder %s35, 0
        // Predicated region
        $region77: #{tpu_custom_call.1} parent=51 // pred_check
          %p473 = pneg %p472
        $region78: #{tpu_custom_call.1} parent=51 // pred_check_branch
          %475 = sbr.rel (%p473) target = $region80
        $region79: #{tpu_custom_call.1} parent=51 // pred_region
          %476 = vst [vmem:[#allocation4] sm:$0xff] 0.0
          %477 = vst [vmem:[#allocation5] sm:$0xff] 0.0
          %478 = vst [vmem:[#allocation6] sm:$0xff] 0.0
          %479 = vst [vmem:[#allocation7] sm:$0xff] 0.0
        $region80: #{tpu_custom_call.1} parent=51 // pred_fallthru
          _
        %v480 = vld [vmem:[%s395] sm:$0xf]
        %v481 = vld [vmem:[%s395 + $0x4] sm:$0xf]
        %v482 = vld [vmem:[%s395 + $0x8] sm:$0xf]
        %v483 = vld [vmem:[%s404] sm:$0xf]
        %v484 = vld [vmem:[%s404 + $0x4] sm:$0xf]
        %v485 = vld [vmem:[%s404 + $0x8] sm:$0xf]
        %v486 = vld [vmem:[#allocation13] sm:$0xff]
        %v487 = vld [vmem:[#allocation13 + $0x8] sm:$0xff]
        %v488 = vld [vmem:[#allocation13 + $0x10] sm:$0xff]
        %v489 = vld [vmem:[#allocation13 + $0x18] sm:$0xff]
        %v490 = vld [vmem:[%s4] sm:$0xf]
        %v492 = vlaneseq
        %v493 = vshrl.u32 %v492, 7
        %v494 = vsub.s32 0, %v493
        %v495 = vrot.slane %v490, %v494
        %v496 = vlaneseq
        %v497 = vshrl.u32 %v496, 7
        %v498 = vsub.s32 1, %v497
        %v499 = vrot.slane %v490, %v498
        %v500 = vlaneseq
        %v501 = vshrl.u32 %v500, 7
        %v502 = vsub.s32 2, %v501
        %v503 = vrot.slane %v490, %v502
        %v504 = vlaneseq
        %v505 = vshrl.u32 %v504, 7
        %v506 = vsub.s32 3, %v505
        %v507 = vrot.slane %v490, %v506
        %v515 = vunpack.c.l.b16 %v480
        %v516 = vunpack.c.l.b16 %v481
        %v517 = vunpack.c.l.b16 %v482
        %v518 = vpack.c.b16 %v516, %v515
        %v519 = vpack.c.b16 %v517, %v517
        %v524 = vunpack.c.l.b16 %v486
        %v525 = vunpack.c.h.b16 %v486
        %v526 = vunpack.c.l.b16 %v487
        %v527 = vunpack.c.h.b16 %v487
        %v528 = vunpack.c.l.b16 %v488
        %v529 = vunpack.c.h.b16 %v488
        %v530 = vunpack.c.l.b16 %v489
        %v531 = vunpack.c.h.b16 %v489
        %v532 = vpack.c.b16 %v528, %v524
        %v533 = vpack.c.b16 %v529, %v525
        %v534 = vpack.c.b16 %v530, %v526
        %v535 = vpack.c.b16 %v531, %v527
        %vm540 = vcmask 130048
        %v542 = vsel %vm540, %v518, 0
        %v545 = vsel %vm540, %v519, 0
        %547 = vmatprep.subr.bf16.mxu0 0
        %548 = vmatpush1.bf16.msra.mxu0 0
        %549 = vmatprep.subr.bf16.mxu0 0
        %550 = vmatpush1.bf16.msra.mxu0 0
        %551 = vmatprep.subr.bf16.mxu0 0
        %552 = vmatpush1.bf16.msra.mxu0 0
        %553 = vmatprep.subr.bf16.mxu0 0
        %554 = vmatpush1.bf16.msra.mxu0 0
        %555 = vmatprep.subr.bf16.mxu0 0
        %556 = vmatpush1.bf16.msra.mxu0 0
        %557 = vmatprep.subr.bf16.mxu0 0
        %558 = vmatpush1.bf16.msra.mxu0 0
        %559 = vmatprep.subr.bf16.mxu0 0
        %560 = vmatpush1.bf16.msra.mxu0 0
        %561 = vmatprep.subr.bf16.mxu0 %v533
        %562 = vmatpush1.bf16.msra.mxu0 %v532
        %563 = vmatprep.subr.bf16.mxu0 0
        %564 = vmatpush2.bf16.msra.mxu0 0
        %565 = vmatprep.subr.bf16.mxu0 0
        %566 = vmatpush2.bf16.msra.mxu0 0
        %567 = vmatprep.subr.bf16.mxu0 0
        %568 = vmatpush2.bf16.msra.mxu0 0
        %569 = vmatprep.subr.bf16.mxu0 0
        %570 = vmatpush2.bf16.msra.mxu0 0
        %571 = vmatprep.subr.bf16.mxu0 0
        %572 = vmatpush2.bf16.msra.mxu0 0
        %573 = vmatprep.subr.bf16.mxu0 0
        %574 = vmatpush2.bf16.msra.mxu0 0
        %575 = vmatprep.subr.bf16.mxu0 0
        %576 = vmatpush2.bf16.msra.mxu0 0
        %577 = vmatprep.subr.bf16.mxu0 0
        %578 = vmatpush2.bf16.msra.mxu0 0
        %579 = vmatprep.mubr.bf16.mxu0 0
        %580 = vmatmul.mubr.bf16.gmra.mxu0 %v542
        %v581 = vpop.f32.mrf.mxu0
        %v582 = vadd.f32 %v495, %v581
        %v583 = vpop.f32.mrf.mxu0
        %v584 = vadd.f32 %v499, %v583
        %v585 = vpop.f32.mrf.mxu0
        %v586 = vadd.f32 %v495, %v585
        %v587 = vpop.f32.mrf.mxu0
        %v588 = vadd.f32 %v499, %v587
        %589 = vmatprep.mubr.bf16.mxu0 0
        %590 = vmatmul.mubr.bf16.gmra.mxu0 %v545
        %v591 = vpop.f32.mrf.mxu0
        %v592 = vadd.f32 %v495, %v591
        %v593 = vpop.f32.mrf.mxu0
        %v594 = vadd.f32 %v499, %v593
        %v595 = vpop.f32.mrf.mxu0
        %v596 = vpop.f32.mrf.mxu0
        %597 = vdwg.mxu0
        %598 = vmatprep.subr.bf16.mxu0 0
        %599 = vmatpush1.bf16.msra.mxu0 0
        %600 = vmatprep.subr.bf16.mxu0 0
        %601 = vmatpush1.bf16.msra.mxu0 0
        %602 = vmatprep.subr.bf16.mxu0 0
        %603 = vmatpush1.bf16.msra.mxu0 0
        %604 = vmatprep.subr.bf16.mxu0 0
        %605 = vmatpush1.bf16.msra.mxu0 0
        %606 = vmatprep.subr.bf16.mxu0 0
        %607 = vmatpush1.bf16.msra.mxu0 0
        %608 = vmatprep.subr.bf16.mxu0 0
        %609 = vmatpush1.bf16.msra.mxu0 0
        %610 = vmatprep.subr.bf16.mxu0 0
        %611 = vmatpush1.bf16.msra.mxu0 0
        %612 = vmatprep.subr.bf16.mxu0 %v535
        %613 = vmatpush1.bf16.msra.mxu0 %v534
        %614 = vmatprep.subr.bf16.mxu0 0
        %615 = vmatpush2.bf16.msra.mxu0 0
        %616 = vmatprep.subr.bf16.mxu0 0
        %617 = vmatpush2.bf16.msra.mxu0 0
        %618 = vmatprep.subr.bf16.mxu0 0
        %619 = vmatpush2.bf16.msra.mxu0 0
        %620 = vmatprep.subr.bf16.mxu0 0
        %621 = vmatpush2.bf16.msra.mxu0 0
        %622 = vmatprep.subr.bf16.mxu0 0
        %623 = vmatpush2.bf16.msra.mxu0 0
        %624 = vmatprep.subr.bf16.mxu0 0
        %625 = vmatpush2.bf16.msra.mxu0 0
        %626 = vmatprep.subr.bf16.mxu0 0
        %627 = vmatpush2.bf16.msra.mxu0 0
        %628 = vmatprep.subr.bf16.mxu0 0
        %629 = vmatpush2.bf16.msra.mxu0 0
        %630 = vmatprep.mubr.bf16.mxu0 0
        %631 = vmatmul.mubr.bf16.gmra.mxu0 %v542
        %v632 = vpop.f32.mrf.mxu0
        %v633 = vadd.f32 %v503, %v632
        %v634 = vpop.f32.mrf.mxu0
        %v635 = vadd.f32 %v507, %v634
        %v636 = vpop.f32.mrf.mxu0
        %v637 = vadd.f32 %v503, %v636
        %v638 = vpop.f32.mrf.mxu0
        %v639 = vadd.f32 %v507, %v638
        %640 = vmatprep.mubr.bf16.mxu0 0
        %641 = vmatmul.mubr.bf16.gmra.mxu0 %v545
        %v642 = vpop.f32.mrf.mxu0
        %v643 = vadd.f32 %v503, %v642
        %v644 = vpop.f32.mrf.mxu0
        %v645 = vadd.f32 %v507, %v644
        %v646 = vpop.f32.mrf.mxu0
        %v647 = vpop.f32.mrf.mxu0
        %648 = vdwg.mxu0
        %649 = vst [vmem:[#allocation2] sm:$0xff] %v582
        %650 = vst [vmem:[#allocation2 + $0x8] sm:$0xff] %v584
        %651 = vst [vmem:[#allocation2 + $0x10] sm:$0xff] %v633
        %652 = vst [vmem:[#allocation2 + $0x18] sm:$0xff] %v635
        %653 = vst [vmem:[#allocation2 + $0x20] sm:$0xff] %v586
        %654 = vst [vmem:[#allocation2 + $0x28] sm:$0xff] %v588
        %655 = vst [vmem:[#allocation2 + $0x30] sm:$0xff] %v637
        %656 = vst [vmem:[#allocation2 + $0x38] sm:$0xff] %v639
        %657 = vst [vmem:[#allocation2 + $0x40] sm:$0xff] %v592
        %658 = vst [vmem:[#allocation2 + $0x48] sm:$0xff] %v594
        %659 = vst [vmem:[#allocation2 + $0x50] sm:$0xff] %v643
        %660 = vst [vmem:[#allocation2 + $0x58] sm:$0xff] %v645
        %v661 = vld [vmem:[#allocation14] sm:$0xff]
        %v662 = vld [vmem:[#allocation14 + $0x8] sm:$0xff]
        %v663 = vld [vmem:[#allocation14 + $0x10] sm:$0xff]
        %v664 = vld [vmem:[#allocation14 + $0x18] sm:$0xff]
        %v665 = vld [vmem:[%s5] sm:$0xf]
        %v667 = vlaneseq
        %v668 = vshrl.u32 %v667, 7
        %v669 = vsub.s32 0, %v668
        %v670 = vrot.slane %v665, %v669
        %v671 = vlaneseq
        %v672 = vshrl.u32 %v671, 7
        %v673 = vsub.s32 1, %v672
        %v674 = vrot.slane %v665, %v673
        %v675 = vlaneseq
        %v676 = vshrl.u32 %v675, 7
        %v677 = vsub.s32 2, %v676
        %v678 = vrot.slane %v665, %v677
        %v679 = vlaneseq
        %v680 = vshrl.u32 %v679, 7
        %v681 = vsub.s32 3, %v680
        %v682 = vrot.slane %v665, %v681
        %v690 = vunpack.c.l.b16 %v483
        %v691 = vunpack.c.l.b16 %v484
        %v692 = vunpack.c.l.b16 %v485
        %v693 = vpack.c.b16 %v691, %v690
        %v694 = vpack.c.b16 %v692, %v692
        %v699 = vunpack.c.l.b16 %v661
        %v700 = vunpack.c.h.b16 %v661
        %v701 = vunpack.c.l.b16 %v662
        %v702 = vunpack.c.h.b16 %v662
        %v703 = vunpack.c.l.b16 %v663
        %v704 = vunpack.c.h.b16 %v663
        %v705 = vunpack.c.l.b16 %v664
        %v706 = vunpack.c.h.b16 %v664
        %v707 = vpack.c.b16 %v703, %v699
        %v708 = vpack.c.b16 %v704, %v700
        %v709 = vpack.c.b16 %v705, %v701
        %v710 = vpack.c.b16 %v706, %v702
        %v716 = vsel %vm540, %v693, 0
        %v719 = vsel %vm540, %v694, 0
        %721 = vmatprep.subr.bf16.mxu0 0
        %722 = vmatpush1.bf16.msra.mxu0 0
        %723 = vmatprep.subr.bf16.mxu0 0
        %724 = vmatpush1.bf16.msra.mxu0 0
        %725 = vmatprep.subr.bf16.mxu0 0
        %726 = vmatpush1.bf16.msra.mxu0 0
        %727 = vmatprep.subr.bf16.mxu0 0
        %728 = vmatpush1.bf16.msra.mxu0 0
        %729 = vmatprep.subr.bf16.mxu0 0
        %730 = vmatpush1.bf16.msra.mxu0 0
        %731 = vmatprep.subr.bf16.mxu0 0
        %732 = vmatpush1.bf16.msra.mxu0 0
        %733 = vmatprep.subr.bf16.mxu0 0
        %734 = vmatpush1.bf16.msra.mxu0 0
        %735 = vmatprep.subr.bf16.mxu0 %v708
        %736 = vmatpush1.bf16.msra.mxu0 %v707
        %737 = vmatprep.subr.bf16.mxu0 0
        %738 = vmatpush2.bf16.msra.mxu0 0
        %739 = vmatprep.subr.bf16.mxu0 0
        %740 = vmatpush2.bf16.msra.mxu0 0
        %741 = vmatprep.subr.bf16.mxu0 0
        %742 = vmatpush2.bf16.msra.mxu0 0
        %743 = vmatprep.subr.bf16.mxu0 0
        %744 = vmatpush2.bf16.msra.mxu0 0
        %745 = vmatprep.subr.bf16.mxu0 0
        %746 = vmatpush2.bf16.msra.mxu0 0
        %747 = vmatprep.subr.bf16.mxu0 0
        %748 = vmatpush2.bf16.msra.mxu0 0
        %749 = vmatprep.subr.bf16.mxu0 0
        %750 = vmatpush2.bf16.msra.mxu0 0
        %751 = vmatprep.subr.bf16.mxu0 0
        %752 = vmatpush2.bf16.msra.mxu0 0
        %753 = vmatprep.mubr.bf16.mxu0 0
        %754 = vmatmul.mubr.bf16.gmra.mxu0 %v716
        %v755 = vpop.f32.mrf.mxu0
        %v756 = vadd.f32 %v670, %v755
        %v757 = vpop.f32.mrf.mxu0
        %v758 = vadd.f32 %v674, %v757
        %v759 = vpop.f32.mrf.mxu0
        %v760 = vadd.f32 %v670, %v759
        %v761 = vpop.f32.mrf.mxu0
        %v762 = vadd.f32 %v674, %v761
        %763 = vmatprep.mubr.bf16.mxu0 0
        %764 = vmatmul.mubr.bf16.gmra.mxu0 %v719
        %v765 = vpop.f32.mrf.mxu0
        %v766 = vadd.f32 %v670, %v765
        %v767 = vpop.f32.mrf.mxu0
        %v768 = vadd.f32 %v674, %v767
        %v769 = vpop.f32.mrf.mxu0
        %v770 = vpop.f32.mrf.mxu0
        %771 = vdwg.mxu0
        %772 = vmatprep.subr.bf16.mxu0 0
        %773 = vmatpush1.bf16.msra.mxu0 0
        %774 = vmatprep.subr.bf16.mxu0 0
        %775 = vmatpush1.bf16.msra.mxu0 0
        %776 = vmatprep.subr.bf16.mxu0 0
        %777 = vmatpush1.bf16.msra.mxu0 0
        %778 = vmatprep.subr.bf16.mxu0 0
        %779 = vmatpush1.bf16.msra.mxu0 0
        %780 = vmatprep.subr.bf16.mxu0 0
        %781 = vmatpush1.bf16.msra.mxu0 0
        %782 = vmatprep.subr.bf16.mxu0 0
        %783 = vmatpush1.bf16.msra.mxu0 0
        %784 = vmatprep.subr.bf16.mxu0 0
        %785 = vmatpush1.bf16.msra.mxu0 0
        %786 = vmatprep.subr.bf16.mxu0 %v710
        %787 = vmatpush1.bf16.msra.mxu0 %v709
        %788 = vmatprep.subr.bf16.mxu0 0
        %789 = vmatpush2.bf16.msra.mxu0 0
        %790 = vmatprep.subr.bf16.mxu0 0
        %791 = vmatpush2.bf16.msra.mxu0 0
        %792 = vmatprep.subr.bf16.mxu0 0
        %793 = vmatpush2.bf16.msra.mxu0 0
        %794 = vmatprep.subr.bf16.mxu0 0
        %795 = vmatpush2.bf16.msra.mxu0 0
        %796 = vmatprep.subr.bf16.mxu0 0
        %797 = vmatpush2.bf16.msra.mxu0 0
        %798 = vmatprep.subr.bf16.mxu0 0
        %799 = vmatpush2.bf16.msra.mxu0 0
        %800 = vmatprep.subr.bf16.mxu0 0
        %801 = vmatpush2.bf16.msra.mxu0 0
        %802 = vmatprep.subr.bf16.mxu0 0
        %803 = vmatpush2.bf16.msra.mxu0 0
        %804 = vmatprep.mubr.bf16.mxu0 0
        %805 = vmatmul.mubr.bf16.gmra.mxu0 %v716
        %v806 = vpop.f32.mrf.mxu0
        %v807 = vadd.f32 %v678, %v806
        %v808 = vpop.f32.mrf.mxu0
        %v809 = vadd.f32 %v682, %v808
        %v810 = vpop.f32.mrf.mxu0
        %v811 = vadd.f32 %v678, %v810
        %v812 = vpop.f32.mrf.mxu0
        %v813 = vadd.f32 %v682, %v812
        %814 = vmatprep.mubr.bf16.mxu0 0
        %815 = vmatmul.mubr.bf16.gmra.mxu0 %v719
        %v816 = vpop.f32.mrf.mxu0
        %v817 = vadd.f32 %v678, %v816
        %v818 = vpop.f32.mrf.mxu0
        %v819 = vadd.f32 %v682, %v818
        %v820 = vpop.f32.mrf.mxu0
        %v821 = vpop.f32.mrf.mxu0
        %822 = vdwg.mxu0
        %823 = vst [vmem:[#allocation3] sm:$0xff] %v756
        %824 = vst [vmem:[#allocation3 + $0x8] sm:$0xff] %v758
        %825 = vst [vmem:[#allocation3 + $0x10] sm:$0xff] %v807
        %826 = vst [vmem:[#allocation3 + $0x18] sm:$0xff] %v809
        %827 = vst [vmem:[#allocation3 + $0x20] sm:$0xff] %v760
        %828 = vst [vmem:[#allocation3 + $0x28] sm:$0xff] %v762
        %829 = vst [vmem:[#allocation3 + $0x30] sm:$0xff] %v811
        %830 = vst [vmem:[#allocation3 + $0x38] sm:$0xff] %v813
        %831 = vst [vmem:[#allocation3 + $0x40] sm:$0xff] %v766
        %832 = vst [vmem:[#allocation3 + $0x48] sm:$0xff] %v768
        %833 = vst [vmem:[#allocation3 + $0x50] sm:$0xff] %v817
        %834 = vst [vmem:[#allocation3 + $0x58] sm:$0xff] %v819
        %v835 = vld [vmem:[#allocation16] sm:$0xff]
        %v836 = vld [vmem:[#allocation16 + $0x8] sm:$0xff]
        %v837 = vld [vmem:[#allocation16 + $0x10] sm:$0xff]
        %v838 = vld [vmem:[#allocation16 + $0x18] sm:$0xff]
        %v839 = vld [vmem:[#allocation16 + $0x20] sm:$0xff]
        %v840 = vld [vmem:[#allocation16 + $0x28] sm:$0xff]
        %v841 = vld [vmem:[#allocation16 + $0x30] sm:$0xff]
        %v842 = vld [vmem:[#allocation16 + $0x38] sm:$0xff]
        %v843 = vld [vmem:[#allocation16 + $0x40] sm:$0xff]
        %v844 = vld [vmem:[#allocation16 + $0x48] sm:$0xff]
        %v845 = vld [vmem:[#allocation16 + $0x50] sm:$0xff]
        %v846 = vld [vmem:[#allocation16 + $0x58] sm:$0xff]
        %v847 = vld [vmem:[#allocation16 + $0x60] sm:$0xff]
        %v848 = vld [vmem:[#allocation16 + $0x68] sm:$0xff]
        %v849 = vld [vmem:[#allocation16 + $0x70] sm:$0xff]
        %v850 = vld [vmem:[#allocation16 + $0x78] sm:$0xff]
        %v851 = vld [vmem:[#allocation16 + $0x80] sm:$0xff]
        %v852 = vld [vmem:[#allocation16 + $0x88] sm:$0xff]
        %v853 = vld [vmem:[#allocation16 + $0x90] sm:$0xff]
        %v854 = vld [vmem:[#allocation16 + $0x98] sm:$0xff]
        %v855 = vld [vmem:[#allocation16 + $0xa0] sm:$0xff]
        %v856 = vld [vmem:[#allocation16 + $0xa8] sm:$0xff]
        %v857 = vld [vmem:[#allocation16 + $0xb0] sm:$0xff]
        %v858 = vld [vmem:[#allocation16 + $0xb8] sm:$0xff]
        %v859 = vld [vmem:[#allocation16 + $0xc0] sm:$0xff]
        %v860 = vld [vmem:[#allocation16 + $0xc8] sm:$0xff]
        %v861 = vld [vmem:[#allocation16 + $0xd0] sm:$0xff]
        %v862 = vld [vmem:[#allocation16 + $0xd8] sm:$0xff]
        %v863 = vld [vmem:[#allocation16 + $0xe0] sm:$0xff]
        %v864 = vld [vmem:[#allocation16 + $0xe8] sm:$0xff]
        %v865 = vld [vmem:[#allocation16 + $0xf0] sm:$0xff]
        %v866 = vld [vmem:[#allocation16 + $0xf8] sm:$0xff]
        %v867 = vld [vmem:[#allocation17] sm:$0xff]
        %v868 = vld [vmem:[#allocation17 + $0x8] sm:$0xff]
        %v869 = vld [vmem:[#allocation17 + $0x10] sm:$0xff]
        %v870 = vld [vmem:[#allocation17 + $0x18] sm:$0xff]
        %v871 = vld [vmem:[#allocation17 + $0x20] sm:$0xff]
        %v872 = vld [vmem:[#allocation17 + $0x28] sm:$0xff]
        %v873 = vld [vmem:[#allocation17 + $0x30] sm:$0xff]
        %v874 = vld [vmem:[#allocation17 + $0x38] sm:$0xff]
        %v875 = vld [vmem:[#allocation17 + $0x40] sm:$0xff]
        %v876 = vld [vmem:[#allocation17 + $0x48] sm:$0xff]
        %v877 = vld [vmem:[#allocation17 + $0x50] sm:$0xff]
        %v878 = vld [vmem:[#allocation17 + $0x58] sm:$0xff]
        %v879 = vld [vmem:[#allocation17 + $0x60] sm:$0xff]
        %v880 = vld [vmem:[#allocation17 + $0x68] sm:$0xff]
        %v881 = vld [vmem:[#allocation17 + $0x70] sm:$0xff]
        %v882 = vld [vmem:[#allocation17 + $0x78] sm:$0xff]
        %v883 = vld [vmem:[#allocation17 + $0x80] sm:$0xff]
        %v884 = vld [vmem:[#allocation17 + $0x88] sm:$0xff]
        %v885 = vld [vmem:[#allocation17 + $0x90] sm:$0xff]
        %v886 = vld [vmem:[#allocation17 + $0x98] sm:$0xff]
        %v887 = vld [vmem:[#allocation17 + $0xa0] sm:$0xff]
        %v888 = vld [vmem:[#allocation17 + $0xa8] sm:$0xff]
        %v889 = vld [vmem:[#allocation17 + $0xb0] sm:$0xff]
        %v890 = vld [vmem:[#allocation17 + $0xb8] sm:$0xff]
        %v891 = vld [vmem:[#allocation17 + $0xc0] sm:$0xff]
        %v892 = vld [vmem:[#allocation17 + $0xc8] sm:$0xff]
        %v893 = vld [vmem:[#allocation17 + $0xd0] sm:$0xff]
        %v894 = vld [vmem:[#allocation17 + $0xd8] sm:$0xff]
        %v895 = vld [vmem:[#allocation17 + $0xe0] sm:$0xff]
        %v896 = vld [vmem:[#allocation17 + $0xe8] sm:$0xff]
        %v897 = vld [vmem:[#allocation17 + $0xf0] sm:$0xff]
        %v898 = vld [vmem:[#allocation17 + $0xf8] sm:$0xff]
        %v899 = vld [vmem:[#allocation4] sm:$0xff]
        %v900 = vld [vmem:[#allocation5] sm:$0xff]
        %v901 = vld [vmem:[#allocation6] sm:$0xff]
        %v902 = vld [vmem:[#allocation7] sm:$0xff]
        %v903 = vld [vmem:[#allocation2] sm:$0xff]
        %v904 = vld [vmem:[#allocation2 + $0x8] sm:$0xff]
        %v905 = vld [vmem:[#allocation2 + $0x10] sm:$0xff]
        %v906 = vld [vmem:[#allocation2 + $0x18] sm:$0xff]
        %v907 = vpack.c.bf16 %v899, %v899
        %v940 = vunpack.c.l.b16 %v835
        %v941 = vunpack.c.h.b16 %v835
        %v942 = vunpack.c.l.b16 %v836
        %v943 = vunpack.c.h.b16 %v836
        %v944 = vunpack.c.l.b16 %v837
        %v945 = vunpack.c.h.b16 %v837
        %v946 = vunpack.c.l.b16 %v838
        %v947 = vunpack.c.h.b16 %v838
        %v948 = vunpack.c.l.b16 %v839
        %v949 = vunpack.c.h.b16 %v839
        %v950 = vunpack.c.l.b16 %v840
        %v951 = vunpack.c.h.b16 %v840
        %v952 = vunpack.c.l.b16 %v841
        %v953 = vunpack.c.h.b16 %v841
        %v954 = vunpack.c.l.b16 %v842
        %v955 = vunpack.c.h.b16 %v842
        %v956 = vunpack.c.l.b16 %v843
        %v957 = vunpack.c.h.b16 %v843
        %v958 = vunpack.c.l.b16 %v844
        %v959 = vunpack.c.h.b16 %v844
        %v960 = vunpack.c.l.b16 %v845
        %v961 = vunpack.c.h.b16 %v845
        %v962 = vunpack.c.l.b16 %v846
        %v963 = vunpack.c.h.b16 %v846
        %v964 = vunpack.c.l.b16 %v847
        %v965 = vunpack.c.h.b16 %v847
        %v966 = vunpack.c.l.b16 %v848
        %v967 = vunpack.c.h.b16 %v848
        %v968 = vunpack.c.l.b16 %v849
        %v969 = vunpack.c.h.b16 %v849
        %v970 = vunpack.c.l.b16 %v850
        %v971 = vunpack.c.h.b16 %v850
        %v972 = vunpack.c.l.b16 %v851
        %v973 = vunpack.c.h.b16 %v851
        %v974 = vunpack.c.l.b16 %v852
        %v975 = vunpack.c.h.b16 %v852
        %v976 = vunpack.c.l.b16 %v853
        %v977 = vunpack.c.h.b16 %v853
        %v978 = vunpack.c.l.b16 %v854
        %v979 = vunpack.c.h.b16 %v854
        %v980 = vunpack.c.l.b16 %v855
        %v981 = vunpack.c.h.b16 %v855
        %v982 = vunpack.c.l.b16 %v856
        %v983 = vunpack.c.h.b16 %v856
        %v984 = vunpack.c.l.b16 %v857
        %v985 = vunpack.c.h.b16 %v857
        %v986 = vunpack.c.l.b16 %v858
        %v987 = vunpack.c.h.b16 %v858
        %v988 = vunpack.c.l.b16 %v859
        %v989 = vunpack.c.h.b16 %v859
        %v990 = vunpack.c.l.b16 %v860
        %v991 = vunpack.c.h.b16 %v860
        %v992 = vunpack.c.l.b16 %v861
        %v993 = vunpack.c.h.b16 %v861
        %v994 = vunpack.c.l.b16 %v862
        %v995 = vunpack.c.h.b16 %v862
        %v996 = vunpack.c.l.b16 %v863
        %v997 = vunpack.c.h.b16 %v863
        %v998 = vunpack.c.l.b16 %v864
        %v999 = vunpack.c.h.b16 %v864
        %v1000 = vunpack.c.l.b16 %v865
        %v1001 = vunpack.c.h.b16 %v865
        %v1002 = vunpack.c.l.b16 %v866
        %v1003 = vunpack.c.h.b16 %v866
        %v1004 = vpack.c.b16 %v944, %v940
        %v1005 = vpack.c.b16 %v945, %v941
        %v1006 = vpack.c.b16 %v946, %v942
        %v1007 = vpack.c.b16 %v947, %v943
        %v1008 = vpack.c.b16 %v952, %v948
        %v1009 = vpack.c.b16 %v953, %v949
        %v1010 = vpack.c.b16 %v954, %v950
        %v1011 = vpack.c.b16 %v955, %v951
        %v1012 = vpack.c.b16 %v960, %v956
        %v1013 = vpack.c.b16 %v961, %v957
        %v1014 = vpack.c.b16 %v962, %v958
        %v1015 = vpack.c.b16 %v963, %v959
        %v1016 = vpack.c.b16 %v968, %v964
        %v1017 = vpack.c.b16 %v969, %v965
        %v1018 = vpack.c.b16 %v970, %v966
        %v1019 = vpack.c.b16 %v971, %v967
        %v1020 = vpack.c.b16 %v976, %v972
        %v1021 = vpack.c.b16 %v977, %v973
        %v1022 = vpack.c.b16 %v978, %v974
        %v1023 = vpack.c.b16 %v979, %v975
        %v1024 = vpack.c.b16 %v984, %v980
        %v1025 = vpack.c.b16 %v985, %v981
        %v1026 = vpack.c.b16 %v986, %v982
        %v1027 = vpack.c.b16 %v987, %v983
        %v1028 = vpack.c.b16 %v992, %v988
        %v1029 = vpack.c.b16 %v993, %v989
        %v1030 = vpack.c.b16 %v994, %v990
        %v1031 = vpack.c.b16 %v995, %v991
        %v1032 = vpack.c.b16 %v1000, %v996
        %v1033 = vpack.c.b16 %v1001, %v997
        %v1034 = vpack.c.b16 %v1002, %v998
        %v1035 = vpack.c.b16 %v1003, %v999
        %1068 = vmatprep.subr.bf16.mxu0 %v1033
        %1069 = vmatpush1.bf16.msra.mxu0 %v1032
        %1070 = vmatprep.subr.bf16.mxu0 %v1029
        %1071 = vmatpush1.bf16.msra.mxu0 %v1028
        %1072 = vmatprep.subr.bf16.mxu0 %v1025
        %1073 = vmatpush1.bf16.msra.mxu0 %v1024
        %1074 = vmatprep.subr.bf16.mxu0 %v1021
        %1075 = vmatpush1.bf16.msra.mxu0 %v1020
        %1076 = vmatprep.subr.bf16.mxu0 %v1017
        %1077 = vmatpush1.bf16.msra.mxu0 %v1016
        %1078 = vmatprep.subr.bf16.mxu0 %v1013
        %1079 = vmatpush1.bf16.msra.mxu0 %v1012
        %1080 = vmatprep.subr.bf16.mxu0 %v1009
        %1081 = vmatpush1.bf16.msra.mxu0 %v1008
        %1082 = vmatprep.subr.bf16.mxu0 %v1005
        %1083 = vmatpush1.bf16.msra.mxu0 %v1004
        %1084 = vmatprep.subr.bf16.mxu0 0
        %1085 = vmatpush2.bf16.msra.mxu0 0
        %1086 = vmatprep.subr.bf16.mxu0 0
        %1087 = vmatpush2.bf16.msra.mxu0 0
        %1088 = vmatprep.subr.bf16.mxu0 0
        %1089 = vmatpush2.bf16.msra.mxu0 0
        %1090 = vmatprep.subr.bf16.mxu0 0
        %1091 = vmatpush2.bf16.msra.mxu0 0
        %1092 = vmatprep.subr.bf16.mxu0 0
        %1093 = vmatpush2.bf16.msra.mxu0 0
        %1094 = vmatprep.subr.bf16.mxu0 0
        %1095 = vmatpush2.bf16.msra.mxu0 0
        %1096 = vmatprep.subr.bf16.mxu0 0
        %1097 = vmatpush2.bf16.msra.mxu0 0
        %1098 = vmatprep.subr.bf16.mxu0 0
        %1099 = vmatpush2.bf16.msra.mxu0 0
        %1100 = vmatprep.mubr.bf16.mxu0 0
        %1101 = vmatmul.mubr.bf16.gmra.mxu0 %v907
        %v1102 = vpop.f32.mrf.mxu0
        %v1103 = vadd.f32 0.0, %v1102
        %v1104 = vpop.f32.mrf.mxu0
        %v1105 = vadd.f32 0.0, %v1104
        %v1106 = vpop.f32.mrf.mxu0
        %v1107 = vpop.f32.mrf.mxu0
        %1108 = vdwg.mxu0
        %1109 = vmatprep.subr.bf16.mxu0 %v1035
        %1110 = vmatpush1.bf16.msra.mxu0 %v1034
        %1111 = vmatprep.subr.bf16.mxu0 %v1031
        %1112 = vmatpush1.bf16.msra.mxu0 %v1030
        %1113 = vmatprep.subr.bf16.mxu0 %v1027
        %1114 = vmatpush1.bf16.msra.mxu0 %v1026
        %1115 = vmatprep.subr.bf16.mxu0 %v1023
        %1116 = vmatpush1.bf16.msra.mxu0 %v1022
        %1117 = vmatprep.subr.bf16.mxu0 %v1019
        %1118 = vmatpush1.bf16.msra.mxu0 %v1018
        %1119 = vmatprep.subr.bf16.mxu0 %v1015
        %1120 = vmatpush1.bf16.msra.mxu0 %v1014
        %1121 = vmatprep.subr.bf16.mxu0 %v1011
        %1122 = vmatpush1.bf16.msra.mxu0 %v1010
        %1123 = vmatprep.subr.bf16.mxu0 %v1007
        %1124 = vmatpush1.bf16.msra.mxu0 %v1006
        %1125 = vmatprep.subr.bf16.mxu0 0
        %1126 = vmatpush2.bf16.msra.mxu0 0
        %1127 = vmatprep.subr.bf16.mxu0 0
        %1128 = vmatpush2.bf16.msra.mxu0 0
        %1129 = vmatprep.subr.bf16.mxu0 0
        %1130 = vmatpush2.bf16.msra.mxu0 0
        %1131 = vmatprep.subr.bf16.mxu0 0
        %1132 = vmatpush2.bf16.msra.mxu0 0
        %1133 = vmatprep.subr.bf16.mxu0 0
        %1134 = vmatpush2.bf16.msra.mxu0 0
        %1135 = vmatprep.subr.bf16.mxu0 0
        %1136 = vmatpush2.bf16.msra.mxu0 0
        %1137 = vmatprep.subr.bf16.mxu0 0
        %1138 = vmatpush2.bf16.msra.mxu0 0
        %1139 = vmatprep.subr.bf16.mxu0 0
        %1140 = vmatpush2.bf16.msra.mxu0 0
        %1141 = vmatprep.mubr.bf16.mxu0 0
        %1142 = vmatmul.mubr.bf16.gmra.mxu0 %v907
        %v1143 = vpop.f32.mrf.mxu0
        %v1144 = vadd.f32 0.0, %v1143
        %v1145 = vpop.f32.mrf.mxu0
        %v1146 = vadd.f32 0.0, %v1145
        %v1147 = vpop.f32.mrf.mxu0
        %v1148 = vpop.f32.mrf.mxu0
        %1149 = vdwg.mxu0
        %v1150 = vadd.f32 %v903, %v1103
        %v1151 = vadd.f32 %v904, %v1105
        %v1152 = vadd.f32 %v905, %v1144
        %v1153 = vadd.f32 %v906, %v1146
        %v1154 = vxor.u32 %v1150, 2147483648
        %v1155 = vmul.f32 %v1154, 1.442695
        %v1156 = vpow.pop %v1155
        %v1157 = vadd.f32 %v1156, 1.0
        %v1158 = vrcp.pop %v1157
        %v1159 = vmul.f32 1.0, %v1158
        %v1160 = vxor.u32 %v1151, 2147483648
        %v1161 = vmul.f32 %v1160, 1.442695
        %v1162 = vpow.pop %v1161
        %v1163 = vadd.f32 %v1162, 1.0
        %v1164 = vrcp.pop %v1163
        %v1165 = vmul.f32 1.0, %v1164
        %v1166 = vtanh.pop %v1152
        %v1167 = vxor.u32 %v1153, 2147483648
        %v1168 = vmul.f32 %v1167, 1.442695
        %v1169 = vpow.pop %v1168
        %v1170 = vadd.f32 %v1169, 1.0
        %v1171 = vrcp.pop %v1170
        %v1172 = vmul.f32 1.0, %v1171
        %v1173 = vmul.f32 %v1165, %v900
        %v1174 = vmul.f32 %v1159, %v1166
        %v1175 = vadd.f32 %v1173, %v1174
        %v1176 = vtanh.pop %v1175
        %v1177 = vmul.f32 %v1172, %v1176
        %s1178 = scalar_lea.vmem [#allocation3], 64
        %v1179 = vld [vmem:[%s1178] sm:$0xff]
        %v1180 = vld [vmem:[%s1178 + $0x8] sm:$0xff]
        %v1181 = vld [vmem:[%s1178 + $0x10] sm:$0xff]
        %v1182 = vld [vmem:[%s1178 + $0x18] sm:$0xff]
        %v1183 = vpack.c.bf16 %v901, %v901
        %v1216 = vunpack.c.l.b16 %v867
        %v1217 = vunpack.c.h.b16 %v867
        %v1218 = vunpack.c.l.b16 %v868
        %v1219 = vunpack.c.h.b16 %v868
        %v1220 = vunpack.c.l.b16 %v869
        %v1221 = vunpack.c.h.b16 %v869
        %v1222 = vunpack.c.l.b16 %v870
        %v1223 = vunpack.c.h.b16 %v870
        %v1224 = vunpack.c.l.b16 %v871
        %v1225 = vunpack.c.h.b16 %v871
        %v1226 = vunpack.c.l.b16 %v872
        %v1227 = vunpack.c.h.b16 %v872
        %v1228 = vunpack.c.l.b16 %v873
        %v1229 = vunpack.c.h.b16 %v873
        %v1230 = vunpack.c.l.b16 %v874
        %v1231 = vunpack.c.h.b16 %v874
        %v1232 = vunpack.c.l.b16 %v875
        %v1233 = vunpack.c.h.b16 %v875
        %v1234 = vunpack.c.l.b16 %v876
        %v1235 = vunpack.c.h.b16 %v876
        %v1236 = vunpack.c.l.b16 %v877
        %v1237 = vunpack.c.h.b16 %v877
        %v1238 = vunpack.c.l.b16 %v878
        %v1239 = vunpack.c.h.b16 %v878
        %v1240 = vunpack.c.l.b16 %v879
        %v1241 = vunpack.c.h.b16 %v879
        %v1242 = vunpack.c.l.b16 %v880
        %v1243 = vunpack.c.h.b16 %v880
        %v1244 = vunpack.c.l.b16 %v881
        %v1245 = vunpack.c.h.b16 %v881
        %v1246 = vunpack.c.l.b16 %v882
        %v1247 = vunpack.c.h.b16 %v882
        %v1248 = vunpack.c.l.b16 %v883
        %v1249 = vunpack.c.h.b16 %v883
        %v1250 = vunpack.c.l.b16 %v884
        %v1251 = vunpack.c.h.b16 %v884
        %v1252 = vunpack.c.l.b16 %v885
        %v1253 = vunpack.c.h.b16 %v885
        %v1254 = vunpack.c.l.b16 %v886
        %v1255 = vunpack.c.h.b16 %v886
        %v1256 = vunpack.c.l.b16 %v887
        %v1257 = vunpack.c.h.b16 %v887
        %v1258 = vunpack.c.l.b16 %v888
        %v1259 = vunpack.c.h.b16 %v888
        %v1260 = vunpack.c.l.b16 %v889
        %v1261 = vunpack.c.h.b16 %v889
        %v1262 = vunpack.c.l.b16 %v890
        %v1263 = vunpack.c.h.b16 %v890
        %v1264 = vunpack.c.l.b16 %v891
        %v1265 = vunpack.c.h.b16 %v891
        %v1266 = vunpack.c.l.b16 %v892
        %v1267 = vunpack.c.h.b16 %v892
        %v1268 = vunpack.c.l.b16 %v893
        %v1269 = vunpack.c.h.b16 %v893
        %v1270 = vunpack.c.l.b16 %v894
        %v1271 = vunpack.c.h.b16 %v894
        %v1272 = vunpack.c.l.b16 %v895
        %v1273 = vunpack.c.h.b16 %v895
        %v1274 = vunpack.c.l.b16 %v896
        %v1275 = vunpack.c.h.b16 %v896
        %v1276 = vunpack.c.l.b16 %v897
        %v1277 = vunpack.c.h.b16 %v897
        %v1278 = vunpack.c.l.b16 %v898
        %v1279 = vunpack.c.h.b16 %v898
        %v1280 = vpack.c.b16 %v1220, %v1216
        %v1281 = vpack.c.b16 %v1221, %v1217
        %v1282 = vpack.c.b16 %v1222, %v1218
        %v1283 = vpack.c.b16 %v1223, %v1219
        %v1284 = vpack.c.b16 %v1228, %v1224
        %v1285 = vpack.c.b16 %v1229, %v1225
        %v1286 = vpack.c.b16 %v1230, %v1226
        %v1287 = vpack.c.b16 %v1231, %v1227
        %v1288 = vpack.c.b16 %v1236, %v1232
        %v1289 = vpack.c.b16 %v1237, %v1233
        %v1290 = vpack.c.b16 %v1238, %v1234
        %v1291 = vpack.c.b16 %v1239, %v1235
        %v1292 = vpack.c.b16 %v1244, %v1240
        %v1293 = vpack.c.b16 %v1245, %v1241
        %v1294 = vpack.c.b16 %v1246, %v1242
        %v1295 = vpack.c.b16 %v1247, %v1243
        %v1296 = vpack.c.b16 %v1252, %v1248
        %v1297 = vpack.c.b16 %v1253, %v1249
        %v1298 = vpack.c.b16 %v1254, %v1250
        %v1299 = vpack.c.b16 %v1255, %v1251
        %v1300 = vpack.c.b16 %v1260, %v1256
        %v1301 = vpack.c.b16 %v1261, %v1257
        %v1302 = vpack.c.b16 %v1262, %v1258
        %v1303 = vpack.c.b16 %v1263, %v1259
        %v1304 = vpack.c.b16 %v1268, %v1264
        %v1305 = vpack.c.b16 %v1269, %v1265
        %v1306 = vpack.c.b16 %v1270, %v1266
        %v1307 = vpack.c.b16 %v1271, %v1267
        %v1308 = vpack.c.b16 %v1276, %v1272
        %v1309 = vpack.c.b16 %v1277, %v1273
        %v1310 = vpack.c.b16 %v1278, %v1274
        %v1311 = vpack.c.b16 %v1279, %v1275
        %1344 = vmatprep.subr.bf16.mxu0 %v1309
        %1345 = vmatpush1.bf16.msra.mxu0 %v1308
        %1346 = vmatprep.subr.bf16.mxu0 %v1305
        %1347 = vmatpush1.bf16.msra.mxu0 %v1304
        %1348 = vmatprep.subr.bf16.mxu0 %v1301
        %1349 = vmatpush1.bf16.msra.mxu0 %v1300
        %1350 = vmatprep.subr.bf16.mxu0 %v1297
        %1351 = vmatpush1.bf16.msra.mxu0 %v1296
        %1352 = vmatprep.subr.bf16.mxu0 %v1293
        %1353 = vmatpush1.bf16.msra.mxu0 %v1292
        %1354 = vmatprep.subr.bf16.mxu0 %v1289
        %1355 = vmatpush1.bf16.msra.mxu0 %v1288
        %1356 = vmatprep.subr.bf16.mxu0 %v1285
        %1357 = vmatpush1.bf16.msra.mxu0 %v1284
        %1358 = vmatprep.subr.bf16.mxu0 %v1281
        %1359 = vmatpush1.bf16.msra.mxu0 %v1280
        %1360 = vmatprep.subr.bf16.mxu0 0
        %1361 = vmatpush2.bf16.msra.mxu0 0
        %1362 = vmatprep.subr.bf16.mxu0 0
        %1363 = vmatpush2.bf16.msra.mxu0 0
        %1364 = vmatprep.subr.bf16.mxu0 0
        %1365 = vmatpush2.bf16.msra.mxu0 0
        %1366 = vmatprep.subr.bf16.mxu0 0
        %1367 = vmatpush2.bf16.msra.mxu0 0
        %1368 = vmatprep.subr.bf16.mxu0 0
        %1369 = vmatpush2.bf16.msra.mxu0 0
        %1370 = vmatprep.subr.bf16.mxu0 0
        %1371 = vmatpush2.bf16.msra.mxu0 0
        %1372 = vmatprep.subr.bf16.mxu0 0
        %1373 = vmatpush2.bf16.msra.mxu0 0
        %1374 = vmatprep.subr.bf16.mxu0 0
        %1375 = vmatpush2.bf16.msra.mxu0 0
        %1376 = vmatprep.mubr.bf16.mxu0 0
        %1377 = vmatmul.mubr.bf16.gmra.mxu0 %v1183
        %v1378 = vpop.f32.mrf.mxu0
        %v1379 = vadd.f32 0.0, %v1378
        %v1380 = vpop.f32.mrf.mxu0
        %v1381 = vadd.f32 0.0, %v1380
        %v1382 = vpop.f32.mrf.mxu0
        %v1383 = vpop.f32.mrf.mxu0
        %1384 = vdwg.mxu0
        %1385 = vmatprep.subr.bf16.mxu0 %v1311
        %1386 = vmatpush1.bf16.msra.mxu0 %v1310
        %1387 = vmatprep.subr.bf16.mxu0 %v1307
        %1388 = vmatpush1.bf16.msra.mxu0 %v1306
        %1389 = vmatprep.subr.bf16.mxu0 %v1303
        %1390 = vmatpush1.bf16.msra.mxu0 %v1302
        %1391 = vmatprep.subr.bf16.mxu0 %v1299
        %1392 = vmatpush1.bf16.msra.mxu0 %v1298
        %1393 = vmatprep.subr.bf16.mxu0 %v1295
        %1394 = vmatpush1.bf16.msra.mxu0 %v1294
        %1395 = vmatprep.subr.bf16.mxu0 %v1291
        %1396 = vmatpush1.bf16.msra.mxu0 %v1290
        %1397 = vmatprep.subr.bf16.mxu0 %v1287
        %1398 = vmatpush1.bf16.msra.mxu0 %v1286
        %1399 = vmatprep.subr.bf16.mxu0 %v1283
        %1400 = vmatpush1.bf16.msra.mxu0 %v1282
        %1401 = vmatprep.subr.bf16.mxu0 0
        %1402 = vmatpush2.bf16.msra.mxu0 0
        %1403 = vmatprep.subr.bf16.mxu0 0
        %1404 = vmatpush2.bf16.msra.mxu0 0
        %1405 = vmatprep.subr.bf16.mxu0 0
        %1406 = vmatpush2.bf16.msra.mxu0 0
        %1407 = vmatprep.subr.bf16.mxu0 0
        %1408 = vmatpush2.bf16.msra.mxu0 0
        %1409 = vmatprep.subr.bf16.mxu0 0
        %1410 = vmatpush2.bf16.msra.mxu0 0
        %1411 = vmatprep.subr.bf16.mxu0 0
        %1412 = vmatpush2.bf16.msra.mxu0 0
        %1413 = vmatprep.subr.bf16.mxu0 0
        %1414 = vmatpush2.bf16.msra.mxu0 0
        %1415 = vmatprep.subr.bf16.mxu0 0
        %1416 = vmatpush2.bf16.msra.mxu0 0
        %1417 = vmatprep.mubr.bf16.mxu0 0
        %1418 = vmatmul.mubr.bf16.gmra.mxu0 %v1183
        %v1419 = vpop.f32.mrf.mxu0
        %v1420 = vadd.f32 0.0, %v1419
        %v1421 = vpop.f32.mrf.mxu0
        %v1422 = vadd.f32 0.0, %v1421
        %v1423 = vpop.f32.mrf.mxu0
        %v1424 = vpop.f32.mrf.mxu0
        %1425 = vdwg.mxu0
        %v1426 = vadd.f32 %v1179, %v1379
        %v1427 = vadd.f32 %v1180, %v1381
        %v1428 = vadd.f32 %v1181, %v1420
        %v1429 = vadd.f32 %v1182, %v1422
        %v1430 = vxor.u32 %v1426, 2147483648
        %v1431 = vmul.f32 %v1430, 1.442695
        %v1432 = vpow.pop %v1431
        %v1433 = vadd.f32 %v1432, 1.0
        %v1434 = vrcp.pop %v1433
        %v1435 = vmul.f32 1.0, %v1434
        %v1436 = vxor.u32 %v1427, 2147483648
        %v1437 = vmul.f32 %v1436, 1.442695
        %v1438 = vpow.pop %v1437
        %v1439 = vadd.f32 %v1438, 1.0
        %v1440 = vrcp.pop %v1439
        %v1441 = vmul.f32 1.0, %v1440
        %v1442 = vtanh.pop %v1428
        %v1443 = vxor.u32 %v1429, 2147483648
        %v1444 = vmul.f32 %v1443, 1.442695
        %v1445 = vpow.pop %v1444
        %v1446 = vadd.f32 %v1445, 1.0
        %v1447 = vrcp.pop %v1446
        %v1448 = vmul.f32 1.0, %v1447
        %v1449 = vmul.f32 %v1441, %v902
        %v1450 = vmul.f32 %v1435, %v1442
        %v1451 = vadd.f32 %v1449, %v1450
        %v1452 = vtanh.pop %v1451
        %v1453 = vmul.f32 %v1448, %v1452
        %s1454 = scalar_select %p472, 1, 0
        %v1455 = vstv %s1454
        %vm1456 = vcmp.eq.s32.totalorder %v1455, 1
        %v1457 = vsel %vm1456, %v901, %v1453
        %v1458 = vsel %vm1456, %v902, %v1451
        %v1459 = vpack.c.bf16 %v1177, %v1177
        %1460 = vst [vmem:[%s457] sm:$0xf] %v1459
        %v1461 = vpack.c.bf16 %v1457, %v1457
        %s1462 = scalar_lea.vmem %s464, 8 [#allocation20]
        %1463 = vst [vmem:[%s1462] sm:$0xf] %v1461
        %s1464 = scalar_lea.vmem [#allocation2], 32
        %v1465 = vld [vmem:[%s1464] sm:$0xff]
        %v1466 = vld [vmem:[%s1464 + $0x8] sm:$0xff]
        %v1467 = vld [vmem:[%s1464 + $0x10] sm:$0xff]
        %v1468 = vld [vmem:[%s1464 + $0x18] sm:$0xff]
        %1469 = vmatprep.subr.bf16.mxu0 %v1033
        %1470 = vmatpush1.bf16.msra.mxu0 %v1032
        %1471 = vmatprep.subr.bf16.mxu0 %v1029
        %1472 = vmatpush1.bf16.msra.mxu0 %v1028
        %1473 = vmatprep.subr.bf16.mxu0 %v1025
        %1474 = vmatpush1.bf16.msra.mxu0 %v1024
        %1475 = vmatprep.subr.bf16.mxu0 %v1021
        %1476 = vmatpush1.bf16.msra.mxu0 %v1020
        %1477 = vmatprep.subr.bf16.mxu0 %v1017
        %1478 = vmatpush1.bf16.msra.mxu0 %v1016
        %1479 = vmatprep.subr.bf16.mxu0 %v1013
        %1480 = vmatpush1.bf16.msra.mxu0 %v1012
        %1481 = vmatprep.subr.bf16.mxu0 %v1009
        %1482 = vmatpush1.bf16.msra.mxu0 %v1008
        %1483 = vmatprep.subr.bf16.mxu0 %v1005
        %1484 = vmatpush1.bf16.msra.mxu0 %v1004
        %1485 = vmatprep.subr.bf16.mxu0 0
        %1486 = vmatpush2.bf16.msra.mxu0 0
        %1487 = vmatprep.subr.bf16.mxu0 0
        %1488 = vmatpush2.bf16.msra.mxu0 0
        %1489 = vmatprep.subr.bf16.mxu0 0
        %1490 = vmatpush2.bf16.msra.mxu0 0
        %1491 = vmatprep.subr.bf16.mxu0 0
        %1492 = vmatpush2.bf16.msra.mxu0 0
        %1493 = vmatprep.subr.bf16.mxu0 0
        %1494 = vmatpush2.bf16.msra.mxu0 0
        %1495 = vmatprep.subr.bf16.mxu0 0
        %1496 = vmatpush2.bf16.msra.mxu0 0
        %1497 = vmatprep.subr.bf16.mxu0 0
        %1498 = vmatpush2.bf16.msra.mxu0 0
        %1499 = vmatprep.subr.bf16.mxu0 0
        %1500 = vmatpush2.bf16.msra.mxu0 0
        %1501 = vmatprep.mubr.bf16.mxu0 0
        %1502 = vmatmul.mubr.bf16.gmra.mxu0 %v1459
        %v1503 = vpop.f32.mrf.mxu0
        %v1504 = vadd.f32 0.0, %v1503
        %v1505 = vpop.f32.mrf.mxu0
        %v1506 = vadd.f32 0.0, %v1505
        %v1507 = vpop.f32.mrf.mxu0
        %v1508 = vpop.f32.mrf.mxu0
        %1509 = vdwg.mxu0
        %1510 = vmatprep.subr.bf16.mxu0 %v1035
        %1511 = vmatpush1.bf16.msra.mxu0 %v1034
        %1512 = vmatprep.subr.bf16.mxu0 %v1031
        %1513 = vmatpush1.bf16.msra.mxu0 %v1030
        %1514 = vmatprep.subr.bf16.mxu0 %v1027
        %1515 = vmatpush1.bf16.msra.mxu0 %v1026
        %1516 = vmatprep.subr.bf16.mxu0 %v1023
        %1517 = vmatpush1.bf16.msra.mxu0 %v1022
        %1518 = vmatprep.subr.bf16.mxu0 %v1019
        %1519 = vmatpush1.bf16.msra.mxu0 %v1018
        %1520 = vmatprep.subr.bf16.mxu0 %v1015
        %1521 = vmatpush1.bf16.msra.mxu0 %v1014
        %1522 = vmatprep.subr.bf16.mxu0 %v1011
        %1523 = vmatpush1.bf16.msra.mxu0 %v1010
        %1524 = vmatprep.subr.bf16.mxu0 %v1007
        %1525 = vmatpush1.bf16.msra.mxu0 %v1006
        %1526 = vmatprep.subr.bf16.mxu0 0
        %1527 = vmatpush2.bf16.msra.mxu0 0
        %1528 = vmatprep.subr.bf16.mxu0 0
        %1529 = vmatpush2.bf16.msra.mxu0 0
        %1530 = vmatprep.subr.bf16.mxu0 0
        %1531 = vmatpush2.bf16.msra.mxu0 0
        %1532 = vmatprep.subr.bf16.mxu0 0
        %1533 = vmatpush2.bf16.msra.mxu0 0
        %1534 = vmatprep.subr.bf16.mxu0 0
        %1535 = vmatpush2.bf16.msra.mxu0 0
        %1536 = vmatprep.subr.bf16.mxu0 0
        %1537 = vmatpush2.bf16.msra.mxu0 0
        %1538 = vmatprep.subr.bf16.mxu0 0
        %1539 = vmatpush2.bf16.msra.mxu0 0
        %1540 = vmatprep.subr.bf16.mxu0 0
        %1541 = vmatpush2.bf16.msra.mxu0 0
        %1542 = vmatprep.mubr.bf16.mxu0 0
        %1543 = vmatmul.mubr.bf16.gmra.mxu0 %v1459
        %v1544 = vpop.f32.mrf.mxu0
        %v1545 = vadd.f32 0.0, %v1544
        %v1546 = vpop.f32.mrf.mxu0
        %v1547 = vadd.f32 0.0, %v1546
        %v1548 = vpop.f32.mrf.mxu0
        %v1549 = vpop.f32.mrf.mxu0
        %1550 = vdwg.mxu0
        %v1551 = vadd.f32 %v1465, %v1504
        %v1552 = vadd.f32 %v1466, %v1506
        %v1553 = vadd.f32 %v1467, %v1545
        %v1554 = vadd.f32 %v1468, %v1547
        %v1555 = vxor.u32 %v1551, 2147483648
        %v1556 = vmul.f32 %v1555, 1.442695
        %v1557 = vpow.pop %v1556
        %v1558 = vadd.f32 %v1557, 1.0
        %v1559 = vrcp.pop %v1558
        %v1560 = vmul.f32 1.0, %v1559
        %v1561 = vxor.u32 %v1552, 2147483648
        %v1562 = vmul.f32 %v1561, 1.442695
        %v1563 = vpow.pop %v1562
        %v1564 = vadd.f32 %v1563, 1.0
        %v1565 = vrcp.pop %v1564
        %v1566 = vmul.f32 1.0, %v1565
        %v1567 = vtanh.pop %v1553
        %v1568 = vxor.u32 %v1554, 2147483648
        %v1569 = vmul.f32 %v1568, 1.442695
        %v1570 = vpow.pop %v1569
        %v1571 = vadd.f32 %v1570, 1.0
        %v1572 = vrcp.pop %v1571
        %v1573 = vmul.f32 1.0, %v1572
        %v1574 = vmul.f32 %v1566, %v1175
        %v1575 = vmul.f32 %v1560, %v1567
        %v1576 = vadd.f32 %v1574, %v1575
        %v1577 = vtanh.pop %v1576
        %v1578 = vmul.f32 %v1573, %v1577
        %s1579 = scalar_lea.vmem [#allocation3], 32
        %v1580 = vld [vmem:[%s1579] sm:$0xff]
        %v1581 = vld [vmem:[%s1579 + $0x8] sm:$0xff]
        %v1582 = vld [vmem:[%s1579 + $0x10] sm:$0xff]
        %v1583 = vld [vmem:[%s1579 + $0x18] sm:$0xff]
        %1584 = vmatprep.subr.bf16.mxu0 %v1309
        %1585 = vmatpush1.bf16.msra.mxu0 %v1308
        %1586 = vmatprep.subr.bf16.mxu0 %v1305
        %1587 = vmatpush1.bf16.msra.mxu0 %v1304
        %1588 = vmatprep.subr.bf16.mxu0 %v1301
        %1589 = vmatpush1.bf16.msra.mxu0 %v1300
        %1590 = vmatprep.subr.bf16.mxu0 %v1297
        %1591 = vmatpush1.bf16.msra.mxu0 %v1296
        %1592 = vmatprep.subr.bf16.mxu0 %v1293
        %1593 = vmatpush1.bf16.msra.mxu0 %v1292
        %1594 = vmatprep.subr.bf16.mxu0 %v1289
        %1595 = vmatpush1.bf16.msra.mxu0 %v1288
        %1596 = vmatprep.subr.bf16.mxu0 %v1285
        %1597 = vmatpush1.bf16.msra.mxu0 %v1284
        %1598 = vmatprep.subr.bf16.mxu0 %v1281
        %1599 = vmatpush1.bf16.msra.mxu0 %v1280
        %1600 = vmatprep.subr.bf16.mxu0 0
        %1601 = vmatpush2.bf16.msra.mxu0 0
        %1602 = vmatprep.subr.bf16.mxu0 0
        %1603 = vmatpush2.bf16.msra.mxu0 0
        %1604 = vmatprep.subr.bf16.mxu0 0
        %1605 = vmatpush2.bf16.msra.mxu0 0
        %1606 = vmatprep.subr.bf16.mxu0 0
        %1607 = vmatpush2.bf16.msra.mxu0 0
        %1608 = vmatprep.subr.bf16.mxu0 0
        %1609 = vmatpush2.bf16.msra.mxu0 0
        %1610 = vmatprep.subr.bf16.mxu0 0
        %1611 = vmatpush2.bf16.msra.mxu0 0
        %1612 = vmatprep.subr.bf16.mxu0 0
        %1613 = vmatpush2.bf16.msra.mxu0 0
        %1614 = vmatprep.subr.bf16.mxu0 0
        %1615 = vmatpush2.bf16.msra.mxu0 0
        %1616 = vmatprep.mubr.bf16.mxu0 0
        %1617 = vmatmul.mubr.bf16.gmra.mxu0 %v1461
        %v1618 = vpop.f32.mrf.mxu0
        %v1619 = vadd.f32 0.0, %v1618
        %v1620 = vpop.f32.mrf.mxu0
        %v1621 = vadd.f32 0.0, %v1620
        %v1622 = vpop.f32.mrf.mxu0
        %v1623 = vpop.f32.mrf.mxu0
        %1624 = vdwg.mxu0
        %1625 = vmatprep.subr.bf16.mxu0 %v1311
        %1626 = vmatpush1.bf16.msra.mxu0 %v1310
        %1627 = vmatprep.subr.bf16.mxu0 %v1307
        %1628 = vmatpush1.bf16.msra.mxu0 %v1306
        %1629 = vmatprep.subr.bf16.mxu0 %v1303
        %1630 = vmatpush1.bf16.msra.mxu0 %v1302
        %1631 = vmatprep.subr.bf16.mxu0 %v1299
        %1632 = vmatpush1.bf16.msra.mxu0 %v1298
        %1633 = vmatprep.subr.bf16.mxu0 %v1295
        %1634 = vmatpush1.bf16.msra.mxu0 %v1294
        %1635 = vmatprep.subr.bf16.mxu0 %v1291
        %1636 = vmatpush1.bf16.msra.mxu0 %v1290
        %1637 = vmatprep.subr.bf16.mxu0 %v1287
        %1638 = vmatpush1.bf16.msra.mxu0 %v1286
        %1639 = vmatprep.subr.bf16.mxu0 %v1283
        %1640 = vmatpush1.bf16.msra.mxu0 %v1282
        %1641 = vmatprep.subr.bf16.mxu0 0
        %1642 = vmatpush2.bf16.msra.mxu0 0
        %1643 = vmatprep.subr.bf16.mxu0 0
        %1644 = vmatpush2.bf16.msra.mxu0 0
        %1645 = vmatprep.subr.bf16.mxu0 0
        %1646 = vmatpush2.bf16.msra.mxu0 0
        %1647 = vmatprep.subr.bf16.mxu0 0
        %1648 = vmatpush2.bf16.msra.mxu0 0
        %1649 = vmatprep.subr.bf16.mxu0 0
        %1650 = vmatpush2.bf16.msra.mxu0 0
        %1651 = vmatprep.subr.bf16.mxu0 0
        %1652 = vmatpush2.bf16.msra.mxu0 0
        %1653 = vmatprep.subr.bf16.mxu0 0
        %1654 = vmatpush2.bf16.msra.mxu0 0
        %1655 = vmatprep.subr.bf16.mxu0 0
        %1656 = vmatpush2.bf16.msra.mxu0 0
        %1657 = vmatprep.mubr.bf16.mxu0 0
        %1658 = vmatmul.mubr.bf16.gmra.mxu0 %v1461
        %v1659 = vpop.f32.mrf.mxu0
        %v1660 = vadd.f32 0.0, %v1659
        %v1661 = vpop.f32.mrf.mxu0
        %v1662 = vadd.f32 0.0, %v1661
        %v1663 = vpop.f32.mrf.mxu0
        %v1664 = vpop.f32.mrf.mxu0
        %1665 = vdwg.mxu0
        %v1666 = vadd.f32 %v1580, %v1619
        %v1667 = vadd.f32 %v1581, %v1621
        %v1668 = vadd.f32 %v1582, %v1660
        %v1669 = vadd.f32 %v1583, %v1662
        %v1670 = vxor.u32 %v1666, 2147483648
        %v1671 = vmul.f32 %v1670, 1.442695
        %v1672 = vpow.pop %v1671
        %v1673 = vadd.f32 %v1672, 1.0
        %v1674 = vrcp.pop %v1673
        %v1675 = vmul.f32 1.0, %v1674
        %v1676 = vxor.u32 %v1667, 2147483648
        %v1677 = vmul.f32 %v1676, 1.442695
        %v1678 = vpow.pop %v1677
        %v1679 = vadd.f32 %v1678, 1.0
        %v1680 = vrcp.pop %v1679
        %v1681 = vmul.f32 1.0, %v1680
        %v1682 = vtanh.pop %v1668
        %v1683 = vxor.u32 %v1669, 2147483648
        %v1684 = vmul.f32 %v1683, 1.442695
        %v1685 = vpow.pop %v1684
        %v1686 = vadd.f32 %v1685, 1.0
        %v1687 = vrcp.pop %v1686
        %v1688 = vmul.f32 1.0, %v1687
        %v1689 = vmul.f32 %v1681, %v1458
        %v1690 = vmul.f32 %v1675, %v1682
        %v1691 = vadd.f32 %v1689, %v1690
        %v1692 = vtanh.pop %v1691
        %v1693 = vmul.f32 %v1688, %v1692
        %v1694 = vpack.c.bf16 %v1578, %v1578
        %s1695 = scalar_lea.vmem %s457, 4 [#allocation19]
        %1696 = vst [vmem:[%s1695] sm:$0xf] %v1694
        %v1697 = vpack.c.bf16 %v1693, %v1693
        %s1698 = scalar_lea.vmem %s464, 4 [#allocation20]
        %1699 = vst [vmem:[%s1698] sm:$0xf] %v1697
        %s1700 = scalar_lea.vmem [#allocation2], 64
        %v1701 = vld [vmem:[%s1700] sm:$0xff]
        %v1702 = vld [vmem:[%s1700 + $0x8] sm:$0xff]
        %v1703 = vld [vmem:[%s1700 + $0x10] sm:$0xff]
        %v1704 = vld [vmem:[%s1700 + $0x18] sm:$0xff]
        %1705 = vmatprep.subr.bf16.mxu0 %v1033
        %1706 = vmatpush1.bf16.msra.mxu0 %v1032
        %1707 = vmatprep.subr.bf16.mxu0 %v1029
        %1708 = vmatpush1.bf16.msra.mxu0 %v1028
        %1709 = vmatprep.subr.bf16.mxu0 %v1025
        %1710 = vmatpush1.bf16.msra.mxu0 %v1024
        %1711 = vmatprep.subr.bf16.mxu0 %v1021
        %1712 = vmatpush1.bf16.msra.mxu0 %v1020
        %1713 = vmatprep.subr.bf16.mxu0 %v1017
        %1714 = vmatpush1.bf16.msra.mxu0 %v1016
        %1715 = vmatprep.subr.bf16.mxu0 %v1013
        %1716 = vmatpush1.bf16.msra.mxu0 %v1012
        %1717 = vmatprep.subr.bf16.mxu0 %v1009
        %1718 = vmatpush1.bf16.msra.mxu0 %v1008
        %1719 = vmatprep.subr.bf16.mxu0 %v1005
        %1720 = vmatpush1.bf16.msra.mxu0 %v1004
        %1721 = vmatprep.subr.bf16.mxu0 0
        %1722 = vmatpush2.bf16.msra.mxu0 0
        %1723 = vmatprep.subr.bf16.mxu0 0
        %1724 = vmatpush2.bf16.msra.mxu0 0
        %1725 = vmatprep.subr.bf16.mxu0 0
        %1726 = vmatpush2.bf16.msra.mxu0 0
        %1727 = vmatprep.subr.bf16.mxu0 0
        %1728 = vmatpush2.bf16.msra.mxu0 0
        %1729 = vmatprep.subr.bf16.mxu0 0
        %1730 = vmatpush2.bf16.msra.mxu0 0
        %1731 = vmatprep.subr.bf16.mxu0 0
        %1732 = vmatpush2.bf16.msra.mxu0 0
        %1733 = vmatprep.subr.bf16.mxu0 0
        %1734 = vmatpush2.bf16.msra.mxu0 0
        %1735 = vmatprep.subr.bf16.mxu0 0
        %1736 = vmatpush2.bf16.msra.mxu0 0
        %1737 = vmatprep.mubr.bf16.mxu0 0
        %1738 = vmatmul.mubr.bf16.gmra.mxu0 %v1694
        %v1739 = vpop.f32.mrf.mxu0
        %v1740 = vadd.f32 0.0, %v1739
        %v1741 = vpop.f32.mrf.mxu0
        %v1742 = vadd.f32 0.0, %v1741
        %v1743 = vpop.f32.mrf.mxu0
        %v1744 = vpop.f32.mrf.mxu0
        %1745 = vdwg.mxu0
        %1746 = vmatprep.subr.bf16.mxu0 %v1035
        %1747 = vmatpush1.bf16.msra.mxu0 %v1034
        %1748 = vmatprep.subr.bf16.mxu0 %v1031
        %1749 = vmatpush1.bf16.msra.mxu0 %v1030
        %1750 = vmatprep.subr.bf16.mxu0 %v1027
        %1751 = vmatpush1.bf16.msra.mxu0 %v1026
        %1752 = vmatprep.subr.bf16.mxu0 %v1023
        %1753 = vmatpush1.bf16.msra.mxu0 %v1022
        %1754 = vmatprep.subr.bf16.mxu0 %v1019
        %1755 = vmatpush1.bf16.msra.mxu0 %v1018
        %1756 = vmatprep.subr.bf16.mxu0 %v1015
        %1757 = vmatpush1.bf16.msra.mxu0 %v1014
        %1758 = vmatprep.subr.bf16.mxu0 %v1011
        %1759 = vmatpush1.bf16.msra.mxu0 %v1010
        %1760 = vmatprep.subr.bf16.mxu0 %v1007
        %1761 = vmatpush1.bf16.msra.mxu0 %v1006
        %1762 = vmatprep.subr.bf16.mxu0 0
        %1763 = vmatpush2.bf16.msra.mxu0 0
        %1764 = vmatprep.subr.bf16.mxu0 0
        %1765 = vmatpush2.bf16.msra.mxu0 0
        %1766 = vmatprep.subr.bf16.mxu0 0
        %1767 = vmatpush2.bf16.msra.mxu0 0
        %1768 = vmatprep.subr.bf16.mxu0 0
        %1769 = vmatpush2.bf16.msra.mxu0 0
        %1770 = vmatprep.subr.bf16.mxu0 0
        %1771 = vmatpush2.bf16.msra.mxu0 0
        %1772 = vmatprep.subr.bf16.mxu0 0
        %1773 = vmatpush2.bf16.msra.mxu0 0
        %1774 = vmatprep.subr.bf16.mxu0 0
        %1775 = vmatpush2.bf16.msra.mxu0 0
        %1776 = vmatprep.subr.bf16.mxu0 0
        %1777 = vmatpush2.bf16.msra.mxu0 0
        %1778 = vmatprep.mubr.bf16.mxu0 0
        %1779 = vmatmul.mubr.bf16.gmra.mxu0 %v1694
        %v1780 = vpop.f32.mrf.mxu0
        %v1781 = vadd.f32 0.0, %v1780
        %v1782 = vpop.f32.mrf.mxu0
        %v1783 = vadd.f32 0.0, %v1782
        %v1784 = vpop.f32.mrf.mxu0
        %v1785 = vpop.f32.mrf.mxu0
        %1786 = vdwg.mxu0
        %v1787 = vadd.f32 %v1701, %v1740
        %v1788 = vadd.f32 %v1702, %v1742
        %v1789 = vadd.f32 %v1703, %v1781
        %v1790 = vadd.f32 %v1704, %v1783
        %v1791 = vxor.u32 %v1787, 2147483648
        %v1792 = vmul.f32 %v1791, 1.442695
        %v1793 = vpow.pop %v1792
        %v1794 = vadd.f32 %v1793, 1.0
        %v1795 = vrcp.pop %v1794
        %v1796 = vmul.f32 1.0, %v1795
        %v1797 = vxor.u32 %v1788, 2147483648
        %v1798 = vmul.f32 %v1797, 1.442695
        %v1799 = vpow.pop %v1798
        %v1800 = vadd.f32 %v1799, 1.0
        %v1801 = vrcp.pop %v1800
        %v1802 = vmul.f32 1.0, %v1801
        %v1803 = vtanh.pop %v1789
        %v1804 = vxor.u32 %v1790, 2147483648
        %v1805 = vmul.f32 %v1804, 1.442695
        %v1806 = vpow.pop %v1805
        %v1807 = vadd.f32 %v1806, 1.0
        %v1808 = vrcp.pop %v1807
        %v1809 = vmul.f32 1.0, %v1808
        %v1810 = vmul.f32 %v1802, %v1576
        %v1811 = vmul.f32 %v1796, %v1803
        %v1812 = vadd.f32 %v1810, %v1811
        %v1813 = vtanh.pop %v1812
        %v1814 = vmul.f32 %v1809, %v1813
        %v1815 = vld [vmem:[#allocation3] sm:$0xff]
        %v1816 = vld [vmem:[#allocation3 + $0x8] sm:$0xff]
        %v1817 = vld [vmem:[#allocation3 + $0x10] sm:$0xff]
        %v1818 = vld [vmem:[#allocation3 + $0x18] sm:$0xff]
        %1819 = vmatprep.subr.bf16.mxu0 %v1309
        %1820 = vmatpush1.bf16.msra.mxu0 %v1308
        %1821 = vmatprep.subr.bf16.mxu0 %v1305
        %1822 = vmatpush1.bf16.msra.mxu0 %v1304
        %1823 = vmatprep.subr.bf16.mxu0 %v1301
        %1824 = vmatpush1.bf16.msra.mxu0 %v1300
        %1825 = vmatprep.subr.bf16.mxu0 %v1297
        %1826 = vmatpush1.bf16.msra.mxu0 %v1296
        %1827 = vmatprep.subr.bf16.mxu0 %v1293
        %1828 = vmatpush1.bf16.msra.mxu0 %v1292
        %1829 = vmatprep.subr.bf16.mxu0 %v1289
        %1830 = vmatpush1.bf16.msra.mxu0 %v1288
        %1831 = vmatprep.subr.bf16.mxu0 %v1285
        %1832 = vmatpush1.bf16.msra.mxu0 %v1284
        %1833 = vmatprep.subr.bf16.mxu0 %v1281
        %1834 = vmatpush1.bf16.msra.mxu0 %v1280
        %1835 = vmatprep.subr.bf16.mxu0 0
        %1836 = vmatpush2.bf16.msra.mxu0 0
        %1837 = vmatprep.subr.bf16.mxu0 0
        %1838 = vmatpush2.bf16.msra.mxu0 0
        %1839 = vmatprep.subr.bf16.mxu0 0
        %1840 = vmatpush2.bf16.msra.mxu0 0
        %1841 = vmatprep.subr.bf16.mxu0 0
        %1842 = vmatpush2.bf16.msra.mxu0 0
        %1843 = vmatprep.subr.bf16.mxu0 0
        %1844 = vmatpush2.bf16.msra.mxu0 0
        %1845 = vmatprep.subr.bf16.mxu0 0
        %1846 = vmatpush2.bf16.msra.mxu0 0
        %1847 = vmatprep.subr.bf16.mxu0 0
        %1848 = vmatpush2.bf16.msra.mxu0 0
        %1849 = vmatprep.subr.bf16.mxu0 0
        %1850 = vmatpush2.bf16.msra.mxu0 0
        %1851 = vmatprep.mubr.bf16.mxu0 0
        %1852 = vmatmul.mubr.bf16.gmra.mxu0 %v1697
        %v1853 = vpop.f32.mrf.mxu0
        %v1854 = vadd.f32 0.0, %v1853
        %v1855 = vpop.f32.mrf.mxu0
        %v1856 = vadd.f32 0.0, %v1855
        %v1857 = vpop.f32.mrf.mxu0
        %v1858 = vpop.f32.mrf.mxu0
        %1859 = vdwg.mxu0
        %1860 = vmatprep.subr.bf16.mxu0 %v1311
        %1861 = vmatpush1.bf16.msra.mxu0 %v1310
        %1862 = vmatprep.subr.bf16.mxu0 %v1307
        %1863 = vmatpush1.bf16.msra.mxu0 %v1306
        %1864 = vmatprep.subr.bf16.mxu0 %v1303
        %1865 = vmatpush1.bf16.msra.mxu0 %v1302
        %1866 = vmatprep.subr.bf16.mxu0 %v1299
        %1867 = vmatpush1.bf16.msra.mxu0 %v1298
        %1868 = vmatprep.subr.bf16.mxu0 %v1295
        %1869 = vmatpush1.bf16.msra.mxu0 %v1294
        %1870 = vmatprep.subr.bf16.mxu0 %v1291
        %1871 = vmatpush1.bf16.msra.mxu0 %v1290
        %1872 = vmatprep.subr.bf16.mxu0 %v1287
        %1873 = vmatpush1.bf16.msra.mxu0 %v1286
        %1874 = vmatprep.subr.bf16.mxu0 %v1283
        %1875 = vmatpush1.bf16.msra.mxu0 %v1282
        %1876 = vmatprep.subr.bf16.mxu0 0
        %1877 = vmatpush2.bf16.msra.mxu0 0
        %1878 = vmatprep.subr.bf16.mxu0 0
        %1879 = vmatpush2.bf16.msra.mxu0 0
        %1880 = vmatprep.subr.bf16.mxu0 0
        %1881 = vmatpush2.bf16.msra.mxu0 0
        %1882 = vmatprep.subr.bf16.mxu0 0
        %1883 = vmatpush2.bf16.msra.mxu0 0
        %1884 = vmatprep.subr.bf16.mxu0 0
        %1885 = vmatpush2.bf16.msra.mxu0 0
        %1886 = vmatprep.subr.bf16.mxu0 0
        %1887 = vmatpush2.bf16.msra.mxu0 0
        %1888 = vmatprep.subr.bf16.mxu0 0
        %1889 = vmatpush2.bf16.msra.mxu0 0
        %1890 = vmatprep.subr.bf16.mxu0 0
        %1891 = vmatpush2.bf16.msra.mxu0 0
        %1892 = vmatprep.mubr.bf16.mxu0 0
        %1893 = vmatmul.mubr.bf16.gmra.mxu0 %v1697
        %v1894 = vpop.f32.mrf.mxu0
        %v1895 = vadd.f32 0.0, %v1894
        %v1896 = vpop.f32.mrf.mxu0
        %v1897 = vadd.f32 0.0, %v1896
        %v1898 = vpop.f32.mrf.mxu0
        %v1899 = vpop.f32.mrf.mxu0
        %1900 = vdwg.mxu0
        %v1901 = vadd.f32 %v1815, %v1854
        %v1902 = vadd.f32 %v1816, %v1856
        %v1903 = vadd.f32 %v1817, %v1895
        %v1904 = vadd.f32 %v1818, %v1897
        %v1905 = vxor.u32 %v1901, 2147483648
        %v1906 = vmul.f32 %v1905, 1.442695
        %v1907 = vpow.pop %v1906
        %v1908 = vadd.f32 %v1907, 1.0
        %v1909 = vrcp.pop %v1908
        %v1910 = vmul.f32 1.0, %v1909
        %v1911 = vxor.u32 %v1902, 2147483648
        %v1912 = vmul.f32 %v1911, 1.442695
        %v1913 = vpow.pop %v1912
        %v1914 = vadd.f32 %v1913, 1.0
        %v1915 = vrcp.pop %v1914
        %v1916 = vmul.f32 1.0, %v1915
        %v1917 = vtanh.pop %v1903
        %v1918 = vxor.u32 %v1904, 2147483648
        %v1919 = vmul.f32 %v1918, 1.442695
        %v1920 = vpow.pop %v1919
        %v1921 = vadd.f32 %v1920, 1.0
        %v1922 = vrcp.pop %v1921
        %v1923 = vmul.f32 1.0, %v1922
        %v1924 = vmul.f32 %v1916, %v1691
        %v1925 = vmul.f32 %v1910, %v1917
        %v1926 = vadd.f32 %v1924, %v1925
        %v1927 = vtanh.pop %v1926
        %v1928 = vmul.f32 %v1923, %v1927
        %v1929 = vpack.c.bf16 %v1814, %v1814
        %s1930 = scalar_lea.vmem %s457, 8 [#allocation19]
        %1931 = vst [vmem:[%s1930] sm:$0xf] %v1929
        %v1932 = vpack.c.bf16 %v1928, %v1928
        %1933 = vst [vmem:[%s464] sm:$0xf] %v1932
        %1934 = vst [vmem:[#allocation4] sm:$0xff] %v1814
        %1935 = vst [vmem:[#allocation5] sm:$0xff] %v1812
        %1936 = vst [vmem:[#allocation6] sm:$0xff] %v1928
        %1937 = vst [vmem:[#allocation7] sm:$0xff] %v1926
        %s1938 = sand.u32 %s223, 1
        %s1939 = scalar_lea.sflag [#allocation10], %s1938
        %s1940 = sand.u32 %s223, 1
        %s1941 = smul.addr %s1940, 12
        %s1942 = scalar_lea.vmem [#allocation19], %s1941
        %s1943 = sand.u32 %s251, 1
        %s1944 = scalar_lea.sflag [#allocation21], %s1943
        %s1945 = sand.u32 %s251, 1
        %s1946 = smul.addr %s1945, 12
        %s1947 = scalar_lea.vmem [#allocation20], %s1946
        // Predicated region
        $region81: #{tpu_custom_call.1} parent=51 // pred_check
          %p1948 = pneg %p233
        $region82: #{tpu_custom_call.1} parent=51 // pred_check_branch
          %1950 = sbr.rel (%p1948) target = $region84
        $region83: #{tpu_custom_call.1} parent=51 // pred_region
          %s1951 = smul.u32 3, %s35
          %s1953 = ssub.s32 192, 192
          %1954 = vsyncadd %s1939, %s1953
          %s1955 = smul.addr %s1951, 64
          %s1956 = scalar_lea.hbm %s8, %s1955
          %s1957 = sshll.u32 %s1942, 4
          %s1958 = int_to_ptr.vmem [resolvable:$true] %s1957
          %1963 = dma.vmem_to_hbm [thread:$0]  %s1958, 192, %s1956, %s1939, 64, 64, 4
        $region84: #{tpu_custom_call.1} parent=51 // pred_fallthru
          _
        // Predicated region
        $region85: #{tpu_custom_call.1} parent=51 // pred_check
          %p1964 = pneg %p261
        $region86: #{tpu_custom_call.1} parent=51 // pred_check_branch
          %1966 = sbr.rel (%p1964) target = $region88
        $region87: #{tpu_custom_call.1} parent=51 // pred_region
          %s1967 = ssub.s32 2, %s35
          %s1968 = smul.u32 3, %s1967
          %s1970 = ssub.s32 192, 192
          %1971 = vsyncadd %s1944, %s1970
          %s1972 = smul.addr %s1968, 64
          %s1973 = scalar_lea.hbm %s9, %s1972
          %s1974 = sshll.u32 %s1947, 4
          %s1975 = int_to_ptr.vmem [resolvable:$true] %s1974
          %1980 = dma.vmem_to_hbm [thread:$0]  %s1975, 192, %s1973, %s1944, 64, 64, 4
        $region88: #{tpu_custom_call.1} parent=51 // pred_fallthru
          _
      $region52: #{tpu_custom_call.1} parent=5 // pred_fallthru
        _
      %p1981 = scmp.le.s32.totalorder 2, %s30
      // Predicated region
      $region89: #{tpu_custom_call.1} parent=5 // pred_check
        %p1982 = pneg %p1981
      $region90: #{tpu_custom_call.1} parent=5 // pred_check_branch
        %1984 = sbr.rel (%p1982) target = $region92
      $region91: #{tpu_custom_call.1} parent=5 // pred_region
        %s1985 = ssub.s32 %s30, 2
        // Predicated region
        $region93: #{tpu_custom_call.1} parent=91 // pred_check
          %p1986 = pneg %p239
        $region94: #{tpu_custom_call.1} parent=91 // pred_check_branch
          %1988 = sbr.rel (%p1986) target = $region96
        $region95: #{tpu_custom_call.1} parent=91 // pred_region
          %s1989 = sand.u32 %s224, 1
          %s1990 = scalar_lea.sflag [#allocation10], %s1989
          %s1991 = sand.u32 %s224, 1
          %s1992 = smul.addr %s1991, 12
          %s1993 = scalar_lea.vmem [#allocation19], %s1992
          %1994 = dma.done %s1990, 192
        $region96: #{tpu_custom_call.1} parent=91 // pred_fallthru
          _
        // Predicated region
        $region97: #{tpu_custom_call.1} parent=91 // pred_check
          %p1995 = pneg %p267
        $region98: #{tpu_custom_call.1} parent=91 // pred_check_branch
          %1997 = sbr.rel (%p1995) target = $region100
        $region99: #{tpu_custom_call.1} parent=91 // pred_region
          %s1998 = sand.u32 %s252, 1
          %s1999 = scalar_lea.sflag [#allocation21], %s1998
          %s2000 = sand.u32 %s252, 1
          %s2001 = smul.addr %s2000, 12
          %s2002 = scalar_lea.vmem [#allocation20], %s2001
          %2003 = dma.done %s1999, 192
        $region100: #{tpu_custom_call.1} parent=91 // pred_fallthru
          _
      $region92: #{tpu_custom_call.1} parent=5 // pred_fallthru
        _
    $region6: #{tpu_custom_call.1} parent=1 // loop_footer
      %s34 = sadd.s32 1, %s30
    $region7: #{tpu_custom_call.1} parent=1 // loop_footer_branch
      %29 = sbr.rel target = $region3
    $region8: #{tpu_custom_call.1} parent=1 // loop_exit
      _
    %2004 = vsyncpa [#allocation9], 1
    %s2005 = scalar_lea.sflag [#allocation9], 1
    %2006 = vsyncpa %s2005, 1
    %2007 = vsyncpa [#allocation12], 1
    %s2008 = scalar_lea.sflag [#allocation12], 1
    %2009 = vsyncpa %s2008, 1
    %2010 = vsyncpa [#allocation15], 1
    %2011 = vsyncpa [#allocation18], 1
    %2012 = vsyncpa [#allocation10], 1
    %s2013 = scalar_lea.sflag [#allocation10], 1
    %2014 = vsyncpa %s2013, 1
    %2015 = vsyncpa [#allocation21], 1
    %s2016 = scalar_lea.sflag [#allocation21], 1
    %2017 = vsyncpa %s2016, 1

</llo_original>
